<compile_context>
chip_gen: v5e
topology: v5e:2x2
jax: 0.10.0
libtpu: 0.0.40
codegen_flags: <defaults>
</compile_context>

<pallas_src>
import jax
import jax.numpy as jnp
from jax import lax
from jax.experimental import pallas as pl
from jax.experimental.pallas import tpu as pltpu

# logical (scaled-down) sizes
N_NODES = 50                 # 50 keypoints (num_classes = 50 * 2)
FEAT_DIM = 64                # stand-in for the 2048-d resnet feature
IMG_C, IMG_H, IMG_W = 3, 16, 16
KH = KW = 3
K_RAW = KH * KW * IMG_C      # 27

# TPU-friendly padded sizes
NODE_PAD = 64                # 50 graph nodes -> 64 sublanes
K_PAD = 32                   # im2col contraction 27 -> 32
F_PAD = 128                  # every feature / lane dimension padded to one 128-lane tile


# ----------------------------------------------------------------------------
# Fused Pallas kernel: backbone + GraphNet + GraphUNet
# ----------------------------------------------------------------------------
def _hopenet_kernel(
    patches_ref, pool_ref, wconv_ref, bconv_ref, wfc_ref, bfc_ref,
    selx_ref, sely_ref, w1x_ref, w1y_ref, w1f_ref, b1_ref,
    agn_ref, w2_ref, b2_ref, w3_ref, b3_ref,
    agu_ref, u1_ref, ub1_ref, u2_ref, ub2_ref, u3_ref, ub3_ref,
    pts_ref, p2d_ref, p3d_ref):
  f32 = jnp.float32

  def mm(a, b):
    return jnp.dot(a, b, preferred_element_type=f32)

  # -------- backbone: 3x3 conv as a matmul, batch folded into M (B*HW rows) --------
  conv = jnp.maximum(mm(patches_ref[...], wconv_ref[...]) + bconv_ref[...], 0.0)
  # global average pool per batch element on the MXU (pool[b, b*HW + i] = 1/HW)
  feat = mm(pool_ref[...], conv)                                # (B, F_PAD)
  # FC head -> 50*2 keypoints, lane-padded to 128
  pts = mm(feat, wfc_ref[...]) + bfc_ref[...]                   # (B, F_PAD)
  pts_ref[...] = pts

  # x / y coordinate columns for every batch element: (NODE_PAD, B)
  # (selection matmul with the lane dims contracted == selx @ pts^T, no transpose needed)
  dn = (((1,), (1,)), ((), ()))
  xnb = lax.dot_general(selx_ref[...], pts, dn, preferred_element_type=f32)
  ynb = lax.dot_general(sely_ref[...], pts, dn, preferred_element_type=f32)
  # feature half of the first GraphNet layer: feat @ W1[2:, :] (one row per batch element)
  gfeat = mm(feat, w1f_ref[...])                                # (B, 128)

  a_gn = agn_ref[...]
  a_gu = agu_ref[...]
  w1x = w1x_ref[...]
  w1y = w1y_ref[...]

  nb = pts.shape[0]
  for b in range(nb):          # static unroll: single launch, no per-grid-step overhead
    # GraphNet layer 1 input, cat([points2D_init, feat_rep], -1) @ W1 done algebraically:
    #   points2D_init @ W1[:2] = x * w1x + y * w1y     (outer products, VPU broadcast)
    #   feat_rep      @ W1[2:] = gfeat[b]              (broadcast over the 50 nodes)
    t_in = xnb[:, b:b + 1] * w1x + ynb[:, b:b + 1] * w1y + gfeat[b:b + 1, :]

    # GraphNet: A @ X @ W + b, ReLU after the first two layers
    h = jnp.maximum(mm(a_gn, t_in) + b1_ref[...], 0.0)
    h = jnp.maximum(mm(mm(a_gn, h), w2_ref[...]) + b2_ref[...], 0.0)
    p2d = mm(mm(a_gn, h), w3_ref[...]) + b3_ref[...]            # (NODE_PAD, 128), cols 0..1 valid
    p2d_ref[b] = p2d

    # GraphUNet stand-in: plain 3-layer graph-conv stack
    h = jnp.maximum(mm(mm(a_gu, p2d), u1_ref[...]) + ub1_ref[...], 0.0)
    h = jnp.maximum(mm(mm(a_gu, h), u2_ref[...]) + ub2_ref[...], 0.0)
    p3d_ref[b] = mm(mm(a_gu, h), u3_ref[...]) + ub3_ref[...]    # cols 0..2 valid


# ----------------------------------------------------------------------------
# Glue: im2col, parameter init / packing, full forward
# ----------------------------------------------------------------------------
def _im2col(x_nhwc):
  Bn, H, W, C = x_nhwc.shape
  xp = jnp.pad(x_nhwc, ((0, 0), (1, 1), (1, 1), (0, 0)))
  cols = []
  for i in range(KH):
    for j in range(KW):
      cols.append(xp[:, i:i + H, j:j + W, :])
  patches = jnp.concatenate(cols, axis=-1)                      # (B, H, W, KH*KW*C)
  return patches.reshape(Bn, H * W, KH * KW * C)


def _pad2(a, rows, cols):
  r, c = a.shape
  return jnp.pad(a, ((0, rows - r), (0, cols - c)))


def _dense(key, fan_in, fan_out, scale=0.05):
  kw, kb = jax.random.split(key)
  w = scale * jax.random.normal(kw, (fan_in, fan_out), jnp.float32)
  b = scale * jax.random.normal(kb, (1, fan_out), jnp.float32)
  return w, b


def _adjacency(n):
  # deterministic row-normalized adjacency (stands in for the learnable A_hat)
  A = jnp.eye(n, dtype=jnp.float32) + 0.1 * jnp.ones((n, n), jnp.float32)
  return A / jnp.sum(A, axis=1, keepdims=True)


def init_params(key):
  ks = jax.random.split(key, 8)
  wconv, bconv = _dense(ks[0], K_RAW, FEAT_DIM)
  wfc, bfc = _dense(ks[1], FEAT_DIM, N_NODES * 2)
  gn_layers = (
      _dense(ks[2], 2 + FEAT_DIM, 128),
      _dense(ks[3], 128, 64),
      _dense(ks[4], 64, 2),
  )
  gu_layers = (
      _dense(ks[5], 2, 32),
      _dense(ks[6], 32, 32),
      _dense(ks[7], 32, 3),
  )
  return {
      "resnet": (wconv, bconv, wfc, bfc),
      "graphnet": {"A": _adjacency(N_NODES), "layers": gn_layers},
      "graphunet": {"A": _adjacency(N_NODES), "layers": gu_layers},
  }


@jax.jit
def hopenet_forward(x_nchw, params):
  Bn = x_nchw.shape[0]
  HW = IMG_H * IMG_W
  x = jnp.transpose(x_nchw, (0, 2, 3, 1))                       # NCHW -> NHWC
  patches = _im2col(x).reshape(Bn * HW, K_RAW)
  patches = jnp.pad(patches, ((0, 0), (0, K_PAD - K_RAW)))      # (B*HW, 32)

  # pooling matrix for the MXU global-average-pool: pool[b, b*HW + i] = 1/HW
  pool = jnp.repeat(jnp.eye(Bn, dtype=jnp.float32), HW, axis=1) / HW     # (B, B*HW)

  wconv, bconv, wfc, bfc = params["resnet"]
  wconv_p = _pad2(wconv, K_PAD, F_PAD)
  bconv_p = _pad2(bconv, 1, F_PAD)
  wfc_p = _pad2(wfc, F_PAD, F_PAD)
  bfc_p = _pad2(bfc, 1, F_PAD)

  # selection matrices: selx[n, 2n] = 1, sely[n, 2n+1] = 1  for n < 50 (x/y de-interleave)
  n_idx = jnp.arange(NODE_PAD)[:, None]
  k_idx = jnp.arange(F_PAD)[None, :]
  valid = n_idx < N_NODES
  selx = ((k_idx == 2 * n_idx) & valid).astype(jnp.float32)
  sely = ((k_idx == 2 * n_idx + 1) & valid).astype(jnp.float32)

  (gw1, gb1), (gw2, gb2), (gw3, gb3) = params["graphnet"]["layers"]
  (uw1, ub1), (uw2, ub2), (uw3, ub3) = params["graphunet"]["layers"]

  args = (
      patches, pool, wconv_p, bconv_p, wfc_p, bfc_p,
      selx, sely,
      gw1[0:1, :], gw1[1:2, :], _pad2(gw1[2:, :], F_PAD, F_PAD), gb1,
      _pad2(params["graphnet"]["A"], NODE_PAD, NODE_PAD),
      _pad2(gw2, F_PAD, F_PAD), _pad2(gb2, 1, F_PAD),
      _pad2(gw3, F_PAD, F_PAD), _pad2(gb3, 1, F_PAD),
      _pad2(params["graphunet"]["A"], NODE_PAD, NODE_PAD),
      _pad2(uw1, F_PAD, F_PAD), _pad2(ub1, 1, F_PAD),
      _pad2(uw2, F_PAD, F_PAD), _pad2(ub2, 1, F_PAD),
      _pad2(uw3, F_PAD, F_PAD), _pad2(ub3, 1, F_PAD),
  )

  vmem = pl.BlockSpec(memory_space=pltpu.MemorySpace.VMEM)
  pts, p2d, p3d = pl.pallas_call(
      _hopenet_kernel,
      out_shape=(
          jax.ShapeDtypeStruct((Bn, F_PAD), jnp.float32),            # pts (100 valid cols)
          jax.ShapeDtypeStruct((Bn, NODE_PAD, F_PAD), jnp.float32),  # points2D slab
          jax.ShapeDtypeStruct((Bn, NODE_PAD, F_PAD), jnp.float32),  # points3D slab
      ),
      in_specs=[vmem] * len(args),
      out_specs=(vmem, vmem, vmem),
  )(*args)

  points2D_init = pts[:, :N_NODES * 2].reshape(Bn, N_NODES, 2)
  points2D = p2d[:, :N_NODES, :2]
  points3D = p3d[:, :N_NODES, :3]
  return points2D_init, points2D, points3D


# ----------------------------------------------------------------------------
# Pure-JAX reference of the same (scaled-down) forward, for a correctness check
# ----------------------------------------------------------------------------
def reference_forward(x_nchw, params):
  Bn = x_nchw.shape[0]
  x = jnp.transpose(x_nchw, (0, 2, 3, 1))
  patches = _im2col(x)                                          # (B, HW, 27)
  wconv, bconv, wfc, bfc = params["resnet"]
  conv = jnp.maximum(jnp.einsum("bpk,kc->bpc", patches, wconv) + bconv, 0.0)
  feat = jnp.mean(conv, axis=1)                                 # (B, 64)
  pts = feat @ wfc + bfc                                        # (B, 100)
  p2d_init = pts.reshape(Bn, N_NODES, 2)
  feat_rep = jnp.broadcast_to(feat[:, None, :], (Bn, N_NODES, FEAT_DIM))
  h = jnp.concatenate([p2d_init, feat_rep], axis=2)

  def gstack(h, A, layers):
    (w1, b1), (w2, b2), (w3, b3) = layers
    h = jnp.maximum(jnp.einsum("nm,bmf->bnf", A, h) @ w1 + b1, 0.0)
    h = jnp.maximum(jnp.einsum("nm,bmf->bnf", A, h) @ w2 + b2, 0.0)
    return jnp.einsum("nm,bmf->bnf", A, h) @ w3 + b3

  p2d = gstack(h, params["graphnet"]["A"], params["graphnet"]["layers"])
  p3d = gstack(p2d, params["graphunet"]["A"], params["graphunet"]["layers"])
  return p2d_init, p2d, p3d


if __name__ == "__main__":
  key = jax.random.PRNGKey(0)
  kx, kp = jax.random.split(key)
  x = jax.random.normal(kx, (2, IMG_C, IMG_H, IMG_W), jnp.float32)
  params = init_params(kp)

  points2D_init, points2D, points3D = hopenet_forward(x, params)
  mesh = None  # generate_hand_mesh=False / generate_obj_mesh=False
  jax.block_until_ready((points2D_init, points2D, points3D))

  assert points2D_init.shape == (2, N_NODES, 2)
  assert points2D.shape == (2, N_NODES, 2)
  assert points3D.shape == (2, N_NODES, 3)
  assert mesh is None

  # numerical cross-check against the pure-JAX reference
  r_init, r_2d, r_3d = reference_forward(x, params)
  assert jnp.allclose(points2D_init, r_init, rtol=2e-2, atol=2e-4)
  assert jnp.allclose(points2D, r_2d, rtol=2e-2, atol=2e-4)
  assert jnp.allclose(points3D, r_3d, rtol=2e-2, atol=2e-4)

  print("KERNEL_OK")
</pallas_src>

<mosaic_0001>
module attributes {stable_mosaic.version = 11 : i64} {
  func.func @_hopenet_kernel(%arg0: memref<512x32xf32, #tpu.memory_space<vmem>>, %arg1: memref<2x512xf32, #tpu.memory_space<vmem>>, %arg2: memref<32x128xf32, #tpu.memory_space<vmem>>, %arg3: memref<1x128xf32, #tpu.memory_space<vmem>>, %arg4: memref<128x128xf32, #tpu.memory_space<vmem>>, %arg5: memref<1x128xf32, #tpu.memory_space<vmem>>, %arg6: memref<64x128xf32, #tpu.memory_space<vmem>>, %arg7: memref<64x128xf32, #tpu.memory_space<vmem>>, %arg8: memref<1x128xf32, #tpu.memory_space<vmem>>, %arg9: memref<1x128xf32, #tpu.memory_space<vmem>>, %arg10: memref<128x128xf32, #tpu.memory_space<vmem>>, %arg11: memref<1x128xf32, #tpu.memory_space<vmem>>, %arg12: memref<64x64xf32, #tpu.memory_space<vmem>>, %arg13: memref<128x128xf32, #tpu.memory_space<vmem>>, %arg14: memref<1x128xf32, #tpu.memory_space<vmem>>, %arg15: memref<128x128xf32, #tpu.memory_space<vmem>>, %arg16: memref<1x128xf32, #tpu.memory_space<vmem>>, %arg17: memref<64x64xf32, #tpu.memory_space<vmem>>, %arg18: memref<128x128xf32, #tpu.memory_space<vmem>>, %arg19: memref<1x128xf32, #tpu.memory_space<vmem>>, %arg20: memref<128x128xf32, #tpu.memory_space<vmem>>, %arg21: memref<1x128xf32, #tpu.memory_space<vmem>>, %arg22: memref<128x128xf32, #tpu.memory_space<vmem>>, %arg23: memref<1x128xf32, #tpu.memory_space<vmem>>, %arg24: memref<2x128xf32, #tpu.memory_space<vmem>>, %arg25: memref<2x64x128xf32, #tpu.memory_space<vmem>>, %arg26: memref<2x64x128xf32, #tpu.memory_space<vmem>>) attributes {dimension_semantics = [], scalar_prefetch = 0 : i64, scratch_operands = 0 : i64, tpu.core_type = #tpu.core_type<tc>} {
    %c0 = arith.constant 0 : index
    %c0_0 = arith.constant 0 : index
    %0 = vector.load %arg0[%c0, %c0_0] : memref<512x32xf32, #tpu.memory_space<vmem>>, vector<512x32xf32>
    %c0_1 = arith.constant 0 : index
    %c0_2 = arith.constant 0 : index
    %1 = vector.load %arg2[%c0_1, %c0_2] : memref<32x128xf32, #tpu.memory_space<vmem>>, vector<32x128xf32>
    %cst = arith.constant dense<0.000000e+00> : vector<512x128xf32>
    %2 = tpu.matmul %0, %1, %cst {dimension_numbers = #tpu.dot_dimension_numbers<[1], [0], [0], [1], [0, 0, 1, 1], [], []>} : vector<512x32xf32>, vector<32x128xf32>, vector<512x128xf32> -> vector<512x128xf32>
    %c0_3 = arith.constant 0 : index
    %c0_4 = arith.constant 0 : index
    %3 = vector.load %arg3[%c0_3, %c0_4] : memref<1x128xf32, #tpu.memory_space<vmem>>, vector<1x128xf32>
    %4 = vector.broadcast %3 : vector<1x128xf32> to vector<512x128xf32>
    %5 = arith.addf %2, %4 : vector<512x128xf32>
    %cst_5 = arith.constant 0.000000e+00 : f32
    %6 = vector.broadcast %cst_5 : f32 to vector<512x128xf32>
    %7 = arith.maximumf %5, %6 : vector<512x128xf32>
    %c0_6 = arith.constant 0 : index
    %c0_7 = arith.constant 0 : index
    %8 = vector.load %arg1[%c0_6, %c0_7] : memref<2x512xf32, #tpu.memory_space<vmem>>, vector<2x512xf32>
    %cst_8 = arith.constant dense<0.000000e+00> : vector<2x128xf32>
    %9 = tpu.matmul %8, %7, %cst_8 {dimension_numbers = #tpu.dot_dimension_numbers<[1], [0], [0], [1], [0, 0, 1, 1], [], []>} : vector<2x512xf32>, vector<512x128xf32>, vector<2x128xf32> -> vector<2x128xf32>
    %c0_9 = arith.constant 0 : index
    %c0_10 = arith.constant 0 : index
    %10 = vector.load %arg4[%c0_9, %c0_10] : memref<128x128xf32, #tpu.memory_space<vmem>>, vector<128x128xf32>
    %cst_11 = arith.constant dense<0.000000e+00> : vector<2x128xf32>
    %11 = tpu.matmul %9, %10, %cst_11 {dimension_numbers = #tpu.dot_dimension_numbers<[1], [0], [0], [1], [0, 0, 1, 1], [], []>} : vector<2x128xf32>, vector<128x128xf32>, vector<2x128xf32> -> vector<2x128xf32>
    %c0_12 = arith.constant 0 : index
    %c0_13 = arith.constant 0 : index
    %12 = vector.load %arg5[%c0_12, %c0_13] : memref<1x128xf32, #tpu.memory_space<vmem>>, vector<1x128xf32>
    %13 = vector.broadcast %12 : vector<1x128xf32> to vector<2x128xf32>
    %14 = arith.addf %11, %13 : vector<2x128xf32>
    %c0_14 = arith.constant 0 : index
    %c0_15 = arith.constant 0 : index
    %15 = vector.load %arg24[%c0_14, %c0_15] : memref<2x128xf32, #tpu.memory_space<vmem>>, vector<2x128xf32>
    tpu.vector_store %arg24[%c0_14, %c0_15], %14 {strides = array<i32>} : memref<2x128xf32, #tpu.memory_space<vmem>>, vector<2x128xf32>,
    %c0_16 = arith.constant 0 : index
    %c0_17 = arith.constant 0 : index
    %16 = vector.load %arg6[%c0_16, %c0_17] : memref<64x128xf32, #tpu.memory_space<vmem>>, vector<64x128xf32>
    %cst_18 = arith.constant dense<0.000000e+00> : vector<64x2xf32>
    %17 = tpu.matmul %16, %14, %cst_18 {dimension_numbers = #tpu.dot_dimension_numbers<[1], [1], [0], [0], [0, 0, 1, 0], [], []>} : vector<64x128xf32>, vector<2x128xf32>, vector<64x2xf32> -> vector<64x2xf32>
    %c0_19 = arith.constant 0 : index
    %c0_20 = arith.constant 0 : index
    %18 = vector.load %arg7[%c0_19, %c0_20] : memref<64x128xf32, #tpu.memory_space<vmem>>, vector<64x128xf32>
    %cst_21 = arith.constant dense<0.000000e+00> : vector<64x2xf32>
    %19 = tpu.matmul %18, %14, %cst_21 {dimension_numbers = #tpu.dot_dimension_numbers<[1], [1], [0], [0], [0, 0, 1, 0], [], []>} : vector<64x128xf32>, vector<2x128xf32>, vector<64x2xf32> -> vector<64x2xf32>
    %c0_22 = arith.constant 0 : index
    %c0_23 = arith.constant 0 : index
    %20 = vector.load %arg10[%c0_22, %c0_23] : memref<128x128xf32, #tpu.memory_space<vmem>>, vector<128x128xf32>
    %cst_24 = arith.constant dense<0.000000e+00> : vector<2x128xf32>
    %21 = tpu.matmul %9, %20, %cst_24 {dimension_numbers = #tpu.dot_dimension_numbers<[1], [0], [0], [1], [0, 0, 1, 1], [], []>} : vector<2x128xf32>, vector<128x128xf32>, vector<2x128xf32> -> vector<2x128xf32>
    %c0_25 = arith.constant 0 : index
    %c0_26 = arith.constant 0 : index
    %22 = vector.load %arg12[%c0_25, %c0_26] : memref<64x64xf32, #tpu.memory_space<vmem>>, vector<64x64xf32>
    %c0_27 = arith.constant 0 : index
    %c0_28 = arith.constant 0 : index
    %23 = vector.load %arg17[%c0_27, %c0_28] : memref<64x64xf32, #tpu.memory_space<vmem>>, vector<64x64xf32>
    %c0_29 = arith.constant 0 : index
    %c0_30 = arith.constant 0 : index
    %24 = vector.load %arg8[%c0_29, %c0_30] : memref<1x128xf32, #tpu.memory_space<vmem>>, vector<1x128xf32>
    %c0_31 = arith.constant 0 : index
    %c0_32 = arith.constant 0 : index
    %25 = vector.load %arg9[%c0_31, %c0_32] : memref<1x128xf32, #tpu.memory_space<vmem>>, vector<1x128xf32>
    %26 = vector.extract_strided_slice %17 {offsets = [0, 0], sizes = [64, 1], strides = [1, 1]} : vector<64x2xf32> to vector<64x1xf32>
    %27 = vector.broadcast %26 : vector<64x1xf32> to vector<64x128xf32>
    %28 = vector.broadcast %24 : vector<1x128xf32> to vector<64x128xf32>
    %29 = arith.mulf %27, %28 : vector<64x128xf32>
    %30 = vector.extract_strided_slice %19 {offsets = [0, 0], sizes = [64, 1], strides = [1, 1]} : vector<64x2xf32> to vector<64x1xf32>
    %31 = vector.broadcast %30 : vector<64x1xf32> to vector<64x128xf32>
    %32 = vector.broadcast %25 : vector<1x128xf32> to vector<64x128xf32>
    %33 = arith.mulf %31, %32 : vector<64x128xf32>
    %34 = arith.addf %29, %33 : vector<64x128xf32>
    %35 = vector.extract_strided_slice %21 {offsets = [0, 0], sizes = [1, 128], strides = [1, 1]} : vector<2x128xf32> to vector<1x128xf32>
    %36 = vector.broadcast %35 : vector<1x128xf32> to vector<64x128xf32>
    %37 = arith.addf %34, %36 : vector<64x128xf32>
    %cst_33 = arith.constant dense<0.000000e+00> : vector<64x128xf32>
    %38 = tpu.matmul %22, %37, %cst_33 {dimension_numbers = #tpu.dot_dimension_numbers<[1], [0], [0], [1], [0, 0, 1, 1], [], []>} : vector<64x64xf32>, vector<64x128xf32>, vector<64x128xf32> -> vector<64x128xf32>
    %c0_34 = arith.constant 0 : index
    %c0_35 = arith.constant 0 : index
    %39 = vector.load %arg11[%c0_34, %c0_35] : memref<1x128xf32, #tpu.memory_space<vmem>>, vector<1x128xf32>
    %40 = vector.broadcast %39 : vector<1x128xf32> to vector<64x128xf32>
    %41 = arith.addf %38, %40 : vector<64x128xf32>
    %cst_36 = arith.constant 0.000000e+00 : f32
    %42 = vector.broadcast %cst_36 : f32 to vector<64x128xf32>
    %43 = arith.maximumf %41, %42 : vector<64x128xf32>
    %cst_37 = arith.constant dense<0.000000e+00> : vector<64x128xf32>
    %44 = tpu.matmul %22, %43, %cst_37 {dimension_numbers = #tpu.dot_dimension_numbers<[1], [0], [0], [1], [0, 0, 1, 1], [], []>} : vector<64x64xf32>, vector<64x128xf32>, vector<64x128xf32> -> vector<64x128xf32>
    %c0_38 = arith.constant 0 : index
    %c0_39 = arith.constant 0 : index
    %45 = vector.load %arg13[%c0_38, %c0_39] : memref<128x128xf32, #tpu.memory_space<vmem>>, vector<128x128xf32>
    %cst_40 = arith.constant dense<0.000000e+00> : vector<64x128xf32>
    %46 = tpu.matmul %44, %45, %cst_40 {dimension_numbers = #tpu.dot_dimension_numbers<[1], [0], [0], [1], [0, 0, 1, 1], [], []>} : vector<64x128xf32>, vector<128x128xf32>, vector<64x128xf32> -> vector<64x128xf32>
    %c0_41 = arith.constant 0 : index
    %c0_42 = arith.constant 0 : index
    %47 = vector.load %arg14[%c0_41, %c0_42] : memref<1x128xf32, #tpu.memory_space<vmem>>, vector<1x128xf32>
    %48 = vector.broadcast %47 : vector<1x128xf32> to vector<64x128xf32>
    %49 = arith.addf %46, %48 : vector<64x128xf32>
    %cst_43 = arith.constant 0.000000e+00 : f32
    %50 = vector.broadcast %cst_43 : f32 to vector<64x128xf32>
    %51 = arith.maximumf %49, %50 : vector<64x128xf32>
    %cst_44 = arith.constant dense<0.000000e+00> : vector<64x128xf32>
    %52 = tpu.matmul %22, %51, %cst_44 {dimension_numbers = #tpu.dot_dimension_numbers<[1], [0], [0], [1], [0, 0, 1, 1], [], []>} : vector<64x64xf32>, vector<64x128xf32>, vector<64x128xf32> -> vector<64x128xf32>
    %c0_45 = arith.constant 0 : index
    %c0_46 = arith.constant 0 : index
    %53 = vector.load %arg15[%c0_45, %c0_46] : memref<128x128xf32, #tpu.memory_space<vmem>>, vector<128x128xf32>
    %cst_47 = arith.constant dense<0.000000e+00> : vector<64x128xf32>
    %54 = tpu.matmul %52, %53, %cst_47 {dimension_numbers = #tpu.dot_dimension_numbers<[1], [0], [0], [1], [0, 0, 1, 1], [], []>} : vector<64x128xf32>, vector<128x128xf32>, vector<64x128xf32> -> vector<64x128xf32>
    %c0_48 = arith.constant 0 : index
    %c0_49 = arith.constant 0 : index
    %55 = vector.load %arg16[%c0_48, %c0_49] : memref<1x128xf32, #tpu.memory_space<vmem>>, vector<1x128xf32>
    %56 = vector.broadcast %55 : vector<1x128xf32> to vector<64x128xf32>
    %57 = arith.addf %54, %56 : vector<64x128xf32>
    %c0_50 = arith.constant 0 : index
    %c0_51 = arith.constant 0 : index
    %c0_52 = arith.constant 0 : index
    %58 = vector.load %arg25[%c0_50, %c0_51, %c0_52] : memref<2x64x128xf32, #tpu.memory_space<vmem>>, vector<1x64x128xf32>
    %59 = vector.shape_cast %58 : vector<1x64x128xf32> to vector<64x128xf32>
    %60 = vector.shape_cast %57 : vector<64x128xf32> to vector<1x64x128xf32>
    tpu.vector_store %arg25[%c0_50, %c0_51, %c0_52], %60 {strides = array<i32>} : memref<2x64x128xf32, #tpu.memory_space<vmem>>, vector<1x64x128xf32>,
    %cst_53 = arith.constant dense<0.000000e+00> : vector<64x128xf32>
    %61 = tpu.matmul %23, %57, %cst_53 {dimension_numbers = #tpu.dot_dimension_numbers<[1], [0], [0], [1], [0, 0, 1, 1], [], []>} : vector<64x64xf32>, vector<64x128xf32>, vector<64x128xf32> -> vector<64x128xf32>
    %c0_54 = arith.constant 0 : index
    %c0_55 = arith.constant 0 : index
    %62 = vector.load %arg18[%c0_54, %c0_55] : memref<128x128xf32, #tpu.memory_space<vmem>>, vector<128x128xf32>
    %cst_56 = arith.constant dense<0.000000e+00> : vector<64x128xf32>
    %63 = tpu.matmul %61, %62, %cst_56 {dimension_numbers = #tpu.dot_dimension_numbers<[1], [0], [0], [1], [0, 0, 1, 1], [], []>} : vector<64x128xf32>, vector<128x128xf32>, vector<64x128xf32> -> vector<64x128xf32>
    %c0_57 = arith.constant 0 : index
    %c0_58 = arith.constant 0 : index
    %64 = vector.load %arg19[%c0_57, %c0_58] : memref<1x128xf32, #tpu.memory_space<vmem>>, vector<1x128xf32>
    %65 = vector.broadcast %64 : vector<1x128xf32> to vector<64x128xf32>
    %66 = arith.addf %63, %65 : vector<64x128xf32>
    %cst_59 = arith.constant 0.000000e+00 : f32
    %67 = vector.broadcast %cst_59 : f32 to vector<64x128xf32>
    %68 = arith.maximumf %66, %67 : vector<64x128xf32>
    %cst_60 = arith.constant dense<0.000000e+00> : vector<64x128xf32>
    %69 = tpu.matmul %23, %68, %cst_60 {dimension_numbers = #tpu.dot_dimension_numbers<[1], [0], [0], [1], [0, 0, 1, 1], [], []>} : vector<64x64xf32>, vector<64x128xf32>, vector<64x128xf32> -> vector<64x128xf32>
    %c0_61 = arith.constant 0 : index
    %c0_62 = arith.constant 0 : index
    %70 = vector.load %arg20[%c0_61, %c0_62] : memref<128x128xf32, #tpu.memory_space<vmem>>, vector<128x128xf32>
    %cst_63 = arith.constant dense<0.000000e+00> : vector<64x128xf32>
    %71 = tpu.matmul %69, %70, %cst_63 {dimension_numbers = #tpu.dot_dimension_numbers<[1], [0], [0], [1], [0, 0, 1, 1], [], []>} : vector<64x128xf32>, vector<128x128xf32>, vector<64x128xf32> -> vector<64x128xf32>
    %c0_64 = arith.constant 0 : index
    %c0_65 = arith.constant 0 : index
    %72 = vector.load %arg21[%c0_64, %c0_65] : memref<1x128xf32, #tpu.memory_space<vmem>>, vector<1x128xf32>
    %73 = vector.broadcast %72 : vector<1x128xf32> to vector<64x128xf32>
    %74 = arith.addf %71, %73 : vector<64x128xf32>
    %cst_66 = arith.constant 0.000000e+00 : f32
    %75 = vector.broadcast %cst_66 : f32 to vector<64x128xf32>
    %76 = arith.maximumf %74, %75 : vector<64x128xf32>
    %cst_67 = arith.constant dense<0.000000e+00> : vector<64x128xf32>
    %77 = tpu.matmul %23, %76, %cst_67 {dimension_numbers = #tpu.dot_dimension_numbers<[1], [0], [0], [1], [0, 0, 1, 1], [], []>} : vector<64x64xf32>, vector<64x128xf32>, vector<64x128xf32> -> vector<64x128xf32>
    %c0_68 = arith.constant 0 : index
    %c0_69 = arith.constant 0 : index
    %78 = vector.load %arg22[%c0_68, %c0_69] : memref<128x128xf32, #tpu.memory_space<vmem>>, vector<128x128xf32>
    %cst_70 = arith.constant dense<0.000000e+00> : vector<64x128xf32>
    %79 = tpu.matmul %77, %78, %cst_70 {dimension_numbers = #tpu.dot_dimension_numbers<[1], [0], [0], [1], [0, 0, 1, 1], [], []>} : vector<64x128xf32>, vector<128x128xf32>, vector<64x128xf32> -> vector<64x128xf32>
    %c0_71 = arith.constant 0 : index
    %c0_72 = arith.constant 0 : index
    %80 = vector.load %arg23[%c0_71, %c0_72] : memref<1x128xf32, #tpu.memory_space<vmem>>, vector<1x128xf32>
    %81 = vector.broadcast %80 : vector<1x128xf32> to vector<64x128xf32>
    %82 = arith.addf %79, %81 : vector<64x128xf32>
    %c0_73 = arith.constant 0 : index
    %c0_74 = arith.constant 0 : index
    %c0_75 = arith.constant 0 : index
    %83 = vector.load %arg26[%c0_73, %c0_74, %c0_75] : memref<2x64x128xf32, #tpu.memory_space<vmem>>, vector<1x64x128xf32>
    %84 = vector.shape_cast %83 : vector<1x64x128xf32> to vector<64x128xf32>
    %85 = vector.shape_cast %82 : vector<64x128xf32> to vector<1x64x128xf32>
    tpu.vector_store %arg26[%c0_73, %c0_74, %c0_75], %85 {strides = array<i32>} : memref<2x64x128xf32, #tpu.memory_space<vmem>>, vector<1x64x128xf32>,
    %86 = vector.extract_strided_slice %17 {offsets = [0, 1], sizes = [64, 1], strides = [1, 1]} : vector<64x2xf32> to vector<64x1xf32>
    %87 = vector.broadcast %86 : vector<64x1xf32> to vector<64x128xf32>
    %88 = vector.broadcast %24 : vector<1x128xf32> to vector<64x128xf32>
    %89 = arith.mulf %87, %88 : vector<64x128xf32>
    %90 = vector.extract_strided_slice %19 {offsets = [0, 1], sizes = [64, 1], strides = [1, 1]} : vector<64x2xf32> to vector<64x1xf32>
    %91 = vector.broadcast %90 : vector<64x1xf32> to vector<64x128xf32>
    %92 = vector.broadcast %25 : vector<1x128xf32> to vector<64x128xf32>
    %93 = arith.mulf %91, %92 : vector<64x128xf32>
    %94 = arith.addf %89, %93 : vector<64x128xf32>
    %95 = vector.extract_strided_slice %21 {offsets = [1, 0], sizes = [1, 128], strides = [1, 1]} : vector<2x128xf32> to vector<1x128xf32>
    %96 = vector.broadcast %95 : vector<1x128xf32> to vector<64x128xf32>
    %97 = arith.addf %94, %96 : vector<64x128xf32>
    %cst_76 = arith.constant dense<0.000000e+00> : vector<64x128xf32>
    %98 = tpu.matmul %22, %97, %cst_76 {dimension_numbers = #tpu.dot_dimension_numbers<[1], [0], [0], [1], [0, 0, 1, 1], [], []>} : vector<64x64xf32>, vector<64x128xf32>, vector<64x128xf32> -> vector<64x128xf32>
    %c0_77 = arith.constant 0 : index
    %c0_78 = arith.constant 0 : index
    %99 = vector.load %arg11[%c0_77, %c0_78] : memref<1x128xf32, #tpu.memory_space<vmem>>, vector<1x128xf32>
    %100 = vector.broadcast %99 : vector<1x128xf32> to vector<64x128xf32>
    %101 = arith.addf %98, %100 : vector<64x128xf32>
    %cst_79 = arith.constant 0.000000e+00 : f32
    %102 = vector.broadcast %cst_79 : f32 to vector<64x128xf32>
    %103 = arith.maximumf %101, %102 : vector<64x128xf32>
    %cst_80 = arith.constant dense<0.000000e+00> : vector<64x128xf32>
    %104 = tpu.matmul %22, %103, %cst_80 {dimension_numbers = #tpu.dot_dimension_numbers<[1], [0], [0], [1], [0, 0, 1, 1], [], []>} : vector<64x64xf32>, vector<64x128xf32>, vector<64x128xf32> -> vector<64x128xf32>
    %c0_81 = arith.constant 0 : index
    %c0_82 = arith.constant 0 : index
    %105 = vector.load %arg13[%c0_81, %c0_82] : memref<128x128xf32, #tpu.memory_space<vmem>>, vector<128x128xf32>
    %cst_83 = arith.constant dense<0.000000e+00> : vector<64x128xf32>
    %106 = tpu.matmul %104, %105, %cst_83 {dimension_numbers = #tpu.dot_dimension_numbers<[1], [0], [0], [1], [0, 0, 1, 1], [], []>} : vector<64x128xf32>, vector<128x128xf32>, vector<64x128xf32> -> vector<64x128xf32>
    %c0_84 = arith.constant 0 : index
    %c0_85 = arith.constant 0 : index
    %107 = vector.load %arg14[%c0_84, %c0_85] : memref<1x128xf32, #tpu.memory_space<vmem>>, vector<1x128xf32>
    %108 = vector.broadcast %107 : vector<1x128xf32> to vector<64x128xf32>
    %109 = arith.addf %106, %108 : vector<64x128xf32>
    %cst_86 = arith.constant 0.000000e+00 : f32
    %110 = vector.broadcast %cst_86 : f32 to vector<64x128xf32>
    %111 = arith.maximumf %109, %110 : vector<64x128xf32>
    %cst_87 = arith.constant dense<0.000000e+00> : vector<64x128xf32>
    %112 = tpu.matmul %22, %111, %cst_87 {dimension_numbers = #tpu.dot_dimension_numbers<[1], [0], [0], [1], [0, 0, 1, 1], [], []>} : vector<64x64xf32>, vector<64x128xf32>, vector<64x128xf32> -> vector<64x128xf32>
    %c0_88 = arith.constant 0 : index
    %c0_89 = arith.constant 0 : index
    %113 = vector.load %arg15[%c0_88, %c0_89] : memref<128x128xf32, #tpu.memory_space<vmem>>, vector<128x128xf32>
    %cst_90 = arith.constant dense<0.000000e+00> : vector<64x128xf32>
    %114 = tpu.matmul %112, %113, %cst_90 {dimension_numbers = #tpu.dot_dimension_numbers<[1], [0], [0], [1], [0, 0, 1, 1], [], []>} : vector<64x128xf32>, vector<128x128xf32>, vector<64x128xf32> -> vector<64x128xf32>
    %c0_91 = arith.constant 0 : index
    %c0_92 = arith.constant 0 : index
    %115 = vector.load %arg16[%c0_91, %c0_92] : memref<1x128xf32, #tpu.memory_space<vmem>>, vector<1x128xf32>
    %116 = vector.broadcast %115 : vector<1x128xf32> to vector<64x128xf32>
    %117 = arith.addf %114, %116 : vector<64x128xf32>
    %c1 = arith.constant 1 : index
    %c0_93 = arith.constant 0 : index
    %c0_94 = arith.constant 0 : index
    %118 = vector.load %arg25[%c1, %c0_93, %c0_94] : memref<2x64x128xf32, #tpu.memory_space<vmem>>, vector<1x64x128xf32>
    %119 = vector.shape_cast %118 : vector<1x64x128xf32> to vector<64x128xf32>
    %120 = vector.shape_cast %117 : vector<64x128xf32> to vector<1x64x128xf32>
    tpu.vector_store %arg25[%c1, %c0_93, %c0_94], %120 {strides = array<i32>} : memref<2x64x128xf32, #tpu.memory_space<vmem>>, vector<1x64x128xf32>,
    %cst_95 = arith.constant dense<0.000000e+00> : vector<64x128xf32>
    %121 = tpu.matmul %23, %117, %cst_95 {dimension_numbers = #tpu.dot_dimension_numbers<[1], [0], [0], [1], [0, 0, 1, 1], [], []>} : vector<64x64xf32>, vector<64x128xf32>, vector<64x128xf32> -> vector<64x128xf32>
    %c0_96 = arith.constant 0 : index
    %c0_97 = arith.constant 0 : index
    %122 = vector.load %arg18[%c0_96, %c0_97] : memref<128x128xf32, #tpu.memory_space<vmem>>, vector<128x128xf32>
    %cst_98 = arith.constant dense<0.000000e+00> : vector<64x128xf32>
    %123 = tpu.matmul %121, %122, %cst_98 {dimension_numbers = #tpu.dot_dimension_numbers<[1], [0], [0], [1], [0, 0, 1, 1], [], []>} : vector<64x128xf32>, vector<128x128xf32>, vector<64x128xf32> -> vector<64x128xf32>
    %c0_99 = arith.constant 0 : index
    %c0_100 = arith.constant 0 : index
    %124 = vector.load %arg19[%c0_99, %c0_100] : memref<1x128xf32, #tpu.memory_space<vmem>>, vector<1x128xf32>
    %125 = vector.broadcast %124 : vector<1x128xf32> to vector<64x128xf32>
    %126 = arith.addf %123, %125 : vector<64x128xf32>
    %cst_101 = arith.constant 0.000000e+00 : f32
    %127 = vector.broadcast %cst_101 : f32 to vector<64x128xf32>
    %128 = arith.maximumf %126, %127 : vector<64x128xf32>
    %cst_102 = arith.constant dense<0.000000e+00> : vector<64x128xf32>
    %129 = tpu.matmul %23, %128, %cst_102 {dimension_numbers = #tpu.dot_dimension_numbers<[1], [0], [0], [1], [0, 0, 1, 1], [], []>} : vector<64x64xf32>, vector<64x128xf32>, vector<64x128xf32> -> vector<64x128xf32>
    %c0_103 = arith.constant 0 : index
    %c0_104 = arith.constant 0 : index
    %130 = vector.load %arg20[%c0_103, %c0_104] : memref<128x128xf32, #tpu.memory_space<vmem>>, vector<128x128xf32>
    %cst_105 = arith.constant dense<0.000000e+00> : vector<64x128xf32>
    %131 = tpu.matmul %129, %130, %cst_105 {dimension_numbers = #tpu.dot_dimension_numbers<[1], [0], [0], [1], [0, 0, 1, 1], [], []>} : vector<64x128xf32>, vector<128x128xf32>, vector<64x128xf32> -> vector<64x128xf32>
    %c0_106 = arith.constant 0 : index
    %c0_107 = arith.constant 0 : index
    %132 = vector.load %arg21[%c0_106, %c0_107] : memref<1x128xf32, #tpu.memory_space<vmem>>, vector<1x128xf32>
    %133 = vector.broadcast %132 : vector<1x128xf32> to vector<64x128xf32>
    %134 = arith.addf %131, %133 : vector<64x128xf32>
    %cst_108 = arith.constant 0.000000e+00 : f32
    %135 = vector.broadcast %cst_108 : f32 to vector<64x128xf32>
    %136 = arith.maximumf %134, %135 : vector<64x128xf32>
    %cst_109 = arith.constant dense<0.000000e+00> : vector<64x128xf32>
    %137 = tpu.matmul %23, %136, %cst_109 {dimension_numbers = #tpu.dot_dimension_numbers<[1], [0], [0], [1], [0, 0, 1, 1], [], []>} : vector<64x64xf32>, vector<64x128xf32>, vector<64x128xf32> -> vector<64x128xf32>
    %c0_110 = arith.constant 0 : index
    %c0_111 = arith.constant 0 : index
    %138 = vector.load %arg22[%c0_110, %c0_111] : memref<128x128xf32, #tpu.memory_space<vmem>>, vector<128x128xf32>
    %cst_112 = arith.constant dense<0.000000e+00> : vector<64x128xf32>
    %139 = tpu.matmul %137, %138, %cst_112 {dimension_numbers = #tpu.dot_dimension_numbers<[1], [0], [0], [1], [0, 0, 1, 1], [], []>} : vector<64x128xf32>, vector<128x128xf32>, vector<64x128xf32> -> vector<64x128xf32>
    %c0_113 = arith.constant 0 : index
    %c0_114 = arith.constant 0 : index
    %140 = vector.load %arg23[%c0_113, %c0_114] : memref<1x128xf32, #tpu.memory_space<vmem>>, vector<1x128xf32>
    %141 = vector.broadcast %140 : vector<1x128xf32> to vector<64x128xf32>
    %142 = arith.addf %139, %141 : vector<64x128xf32>
    %c1_115 = arith.constant 1 : index
    %c0_116 = arith.constant 0 : index
    %c0_117 = arith.constant 0 : index
    %143 = vector.load %arg26[%c1_115, %c0_116, %c0_117] : memref<2x64x128xf32, #tpu.memory_space<vmem>>, vector<1x64x128xf32>
    %144 = vector.shape_cast %143 : vector<1x64x128xf32> to vector<64x128xf32>
    %145 = vector.shape_cast %142 : vector<64x128xf32> to vector<1x64x128xf32>
    tpu.vector_store %arg26[%c1_115, %c0_116, %c0_117], %145 {strides = array<i32>} : memref<2x64x128xf32, #tpu.memory_space<vmem>>, vector<1x64x128xf32>,
    return
  }
}

</mosaic_0001>

<llo_original>
// kernel: hopenet_forward.1
$region0: #{hopenet_forward.1}
  #allocation0 [shape = 'u32[]', space=smem, size = 0x4, offset = 0x4, fixed_abs, tag = 'smem constant byte address 0x4 - core index']
  #allocation1 [shape = 'u32[72,128]{1,0:T(1,128)}', space=vmem, size = 0x9000, scoped, tag = 'internal scratch']
  %s0 = inlined_call_operand.vmem [shape: f32[512,32], index: 0, kind: input, shape index: {}]
  %s1 = inlined_call_operand.vmem [shape: f32[2,512], index: 1, kind: input, shape index: {}]
  %s2 = inlined_call_operand.vmem [shape: f32[32,128], index: 2, kind: input, shape index: {}]
  %s3 = inlined_call_operand.vmem [shape: f32[1,128], index: 3, kind: input, shape index: {}]
  %s4 = inlined_call_operand.vmem [shape: f32[128,128], index: 4, kind: input, shape index: {}]
  %s5 = inlined_call_operand.vmem [shape: f32[1,128], index: 5, kind: input, shape index: {}]
  %s6 = inlined_call_operand.vmem [shape: f32[64,128], index: 6, kind: input, shape index: {}]
  %s7 = inlined_call_operand.vmem [shape: f32[64,128], index: 7, kind: input, shape index: {}]
  %s8 = inlined_call_operand.vmem [shape: f32[1,128], index: 8, kind: input, shape index: {}]
  %s9 = inlined_call_operand.vmem [shape: f32[1,128], index: 9, kind: input, shape index: {}]
  %s10 = inlined_call_operand.vmem [shape: f32[128,128], index: 10, kind: input, shape index: {}]
  %s11 = inlined_call_operand.vmem [shape: f32[1,128], index: 11, kind: input, shape index: {}]
  %s12 = inlined_call_operand.vmem [shape: f32[64,64], index: 12, kind: input, shape index: {}]
  %s13 = inlined_call_operand.vmem [shape: f32[128,128], index: 13, kind: input, shape index: {}]
  %s14 = inlined_call_operand.vmem [shape: f32[1,128], index: 14, kind: input, shape index: {}]
  %s15 = inlined_call_operand.vmem [shape: f32[128,128], index: 15, kind: input, shape index: {}]
  %s16 = inlined_call_operand.vmem [shape: f32[1,128], index: 16, kind: input, shape index: {}]
  %s17 = inlined_call_operand.vmem [shape: f32[64,64], index: 17, kind: input, shape index: {}]
  %s18 = inlined_call_operand.vmem [shape: f32[128,128], index: 18, kind: input, shape index: {}]
  %s19 = inlined_call_operand.vmem [shape: f32[1,128], index: 19, kind: input, shape index: {}]
  %s20 = inlined_call_operand.vmem [shape: f32[128,128], index: 20, kind: input, shape index: {}]
  %s21 = inlined_call_operand.vmem [shape: f32[1,128], index: 21, kind: input, shape index: {}]
  %s22 = inlined_call_operand.vmem [shape: f32[128,128], index: 22, kind: input, shape index: {}]
  %s23 = inlined_call_operand.vmem [shape: f32[1,128], index: 23, kind: input, shape index: {}]
  %s24 = inlined_call_operand.vmem [shape: f32[2,128], index: 24, kind: output, shape index: {0}]
  %s25 = inlined_call_operand.vmem [shape: f32[2,64,128], index: 25, kind: output, shape index: {1}]
  %s26 = inlined_call_operand.vmem [shape: f32[2,64,128], index: 26, kind: output, shape index: {2}]
  %27 = xla_tuple %s24, %s25, %s26
  %s28 = sld [smem:[#allocation0]]
  $region122: #{hopenet_forward.1} parent=0
    _
  %s30 = ssub.s32 1, %s28
  %s31 = scalar_select 0, %s30, %s28
  // Predicated region
  $region2: #{hopenet_forward.1} parent=0 // pred_check
    _
  $region3: #{hopenet_forward.1} parent=0 // pred_check_branch
    %33 = sbr.rel (0) target = $region5
  $region4: #{hopenet_forward.1} parent=0 // pred_region
    _
  $region5: #{hopenet_forward.1} parent=0 // pred_fallthru
    _
  // Predicated region
  $region6: #{hopenet_forward.1} parent=0 // pred_check
    _
  $region7: #{hopenet_forward.1} parent=0 // pred_check_branch
    %35 = sbr.rel (0) target = $region9
  $region8: #{hopenet_forward.1} parent=0 // pred_region
    _
  $region9: #{hopenet_forward.1} parent=0 // pred_fallthru
    _
  // Predicated region
  $region10: #{hopenet_forward.1} parent=0 // pred_check
    _
  $region11: #{hopenet_forward.1} parent=0 // pred_check_branch
    %37 = sbr.rel (0) target = $region13
  $region12: #{hopenet_forward.1} parent=0 // pred_region
    _
  $region13: #{hopenet_forward.1} parent=0 // pred_fallthru
    _
  // Predicated region
  $region14: #{hopenet_forward.1} parent=0 // pred_check
    _
  $region15: #{hopenet_forward.1} parent=0 // pred_check_branch
    %39 = sbr.rel (0) target = $region17
  $region16: #{hopenet_forward.1} parent=0 // pred_region
    _
  $region17: #{hopenet_forward.1} parent=0 // pred_fallthru
    _
  // Predicated region
  $region18: #{hopenet_forward.1} parent=0 // pred_check
    _
  $region19: #{hopenet_forward.1} parent=0 // pred_check_branch
    %41 = sbr.rel (0) target = $region21
  $region20: #{hopenet_forward.1} parent=0 // pred_region
    _
  $region21: #{hopenet_forward.1} parent=0 // pred_fallthru
    _
  // Predicated region
  $region22: #{hopenet_forward.1} parent=0 // pred_check
    _
  $region23: #{hopenet_forward.1} parent=0 // pred_check_branch
    %43 = sbr.rel (0) target = $region25
  $region24: #{hopenet_forward.1} parent=0 // pred_region
    _
  $region25: #{hopenet_forward.1} parent=0 // pred_fallthru
    _
  // Predicated region
  $region26: #{hopenet_forward.1} parent=0 // pred_check
    _
  $region27: #{hopenet_forward.1} parent=0 // pred_check_branch
    %45 = sbr.rel (0) target = $region29
  $region28: #{hopenet_forward.1} parent=0 // pred_region
    _
  $region29: #{hopenet_forward.1} parent=0 // pred_fallthru
    _
  // Predicated region
  $region30: #{hopenet_forward.1} parent=0 // pred_check
    _
  $region31: #{hopenet_forward.1} parent=0 // pred_check_branch
    %47 = sbr.rel (0) target = $region33
  $region32: #{hopenet_forward.1} parent=0 // pred_region
    _
  $region33: #{hopenet_forward.1} parent=0 // pred_fallthru
    _
  // Predicated region
  $region34: #{hopenet_forward.1} parent=0 // pred_check
    _
  $region35: #{hopenet_forward.1} parent=0 // pred_check_branch
    %49 = sbr.rel (0) target = $region37
  $region36: #{hopenet_forward.1} parent=0 // pred_region
    _
  $region37: #{hopenet_forward.1} parent=0 // pred_fallthru
    _
  // Predicated region
  $region38: #{hopenet_forward.1} parent=0 // pred_check
    _
  $region39: #{hopenet_forward.1} parent=0 // pred_check_branch
    %51 = sbr.rel (0) target = $region41
  $region40: #{hopenet_forward.1} parent=0 // pred_region
    _
  $region41: #{hopenet_forward.1} parent=0 // pred_fallthru
    _
  // Predicated region
  $region42: #{hopenet_forward.1} parent=0 // pred_check
    _
  $region43: #{hopenet_forward.1} parent=0 // pred_check_branch
    %53 = sbr.rel (0) target = $region45
  $region44: #{hopenet_forward.1} parent=0 // pred_region
    _
  $region45: #{hopenet_forward.1} parent=0 // pred_fallthru
    _
  // Predicated region
  $region46: #{hopenet_forward.1} parent=0 // pred_check
    _
  $region47: #{hopenet_forward.1} parent=0 // pred_check_branch
    %55 = sbr.rel (0) target = $region49
  $region48: #{hopenet_forward.1} parent=0 // pred_region
    _
  $region49: #{hopenet_forward.1} parent=0 // pred_fallthru
    _
  // Predicated region
  $region50: #{hopenet_forward.1} parent=0 // pred_check
    _
  $region51: #{hopenet_forward.1} parent=0 // pred_check_branch
    %57 = sbr.rel (0) target = $region53
  $region52: #{hopenet_forward.1} parent=0 // pred_region
    _
  $region53: #{hopenet_forward.1} parent=0 // pred_fallthru
    _
  // Predicated region
  $region54: #{hopenet_forward.1} parent=0 // pred_check
    _
  $region55: #{hopenet_forward.1} parent=0 // pred_check_branch
    %59 = sbr.rel (0) target = $region57
  $region56: #{hopenet_forward.1} parent=0 // pred_region
    _
  $region57: #{hopenet_forward.1} parent=0 // pred_fallthru
    _
  // Predicated region
  $region58: #{hopenet_forward.1} parent=0 // pred_check
    _
  $region59: #{hopenet_forward.1} parent=0 // pred_check_branch
    %61 = sbr.rel (0) target = $region61
  $region60: #{hopenet_forward.1} parent=0 // pred_region
    _
  $region61: #{hopenet_forward.1} parent=0 // pred_fallthru
    _
  // Predicated region
  $region62: #{hopenet_forward.1} parent=0 // pred_check
    _
  $region63: #{hopenet_forward.1} parent=0 // pred_check_branch
    %63 = sbr.rel (0) target = $region65
  $region64: #{hopenet_forward.1} parent=0 // pred_region
    _
  $region65: #{hopenet_forward.1} parent=0 // pred_fallthru
    _
  // Predicated region
  $region66: #{hopenet_forward.1} parent=0 // pred_check
    _
  $region67: #{hopenet_forward.1} parent=0 // pred_check_branch
    %65 = sbr.rel (0) target = $region69
  $region68: #{hopenet_forward.1} parent=0 // pred_region
    _
  $region69: #{hopenet_forward.1} parent=0 // pred_fallthru
    _
  // Predicated region
  $region70: #{hopenet_forward.1} parent=0 // pred_check
    _
  $region71: #{hopenet_forward.1} parent=0 // pred_check_branch
    %67 = sbr.rel (0) target = $region73
  $region72: #{hopenet_forward.1} parent=0 // pred_region
    _
  $region73: #{hopenet_forward.1} parent=0 // pred_fallthru
    _
  // Predicated region
  $region74: #{hopenet_forward.1} parent=0 // pred_check
    _
  $region75: #{hopenet_forward.1} parent=0 // pred_check_branch
    %69 = sbr.rel (0) target = $region77
  $region76: #{hopenet_forward.1} parent=0 // pred_region
    _
  $region77: #{hopenet_forward.1} parent=0 // pred_fallthru
    _
  // Predicated region
  $region78: #{hopenet_forward.1} parent=0 // pred_check
    _
  $region79: #{hopenet_forward.1} parent=0 // pred_check_branch
    %71 = sbr.rel (0) target = $region81
  $region80: #{hopenet_forward.1} parent=0 // pred_region
    _
  $region81: #{hopenet_forward.1} parent=0 // pred_fallthru
    _
  // Predicated region
  $region82: #{hopenet_forward.1} parent=0 // pred_check
    _
  $region83: #{hopenet_forward.1} parent=0 // pred_check_branch
    %73 = sbr.rel (0) target = $region85
  $region84: #{hopenet_forward.1} parent=0 // pred_region
    _
  $region85: #{hopenet_forward.1} parent=0 // pred_fallthru
    _
  // Predicated region
  $region86: #{hopenet_forward.1} parent=0 // pred_check
    _
  $region87: #{hopenet_forward.1} parent=0 // pred_check_branch
    %75 = sbr.rel (0) target = $region89
  $region88: #{hopenet_forward.1} parent=0 // pred_region
    _
  $region89: #{hopenet_forward.1} parent=0 // pred_fallthru
    _
  // Predicated region
  $region90: #{hopenet_forward.1} parent=0 // pred_check
    _
  $region91: #{hopenet_forward.1} parent=0 // pred_check_branch
    %77 = sbr.rel (0) target = $region93
  $region92: #{hopenet_forward.1} parent=0 // pred_region
    _
  $region93: #{hopenet_forward.1} parent=0 // pred_fallthru
    _
  // Predicated region
  $region94: #{hopenet_forward.1} parent=0 // pred_check
    _
  $region95: #{hopenet_forward.1} parent=0 // pred_check_branch
    %79 = sbr.rel (0) target = $region97
  $region96: #{hopenet_forward.1} parent=0 // pred_region
    _
  $region97: #{hopenet_forward.1} parent=0 // pred_fallthru
    _
  %v80 = vld [vmem:[%s0] sm:$0xff]
  %v81 = vld [vmem:[%s0 + $0x8] sm:$0xff]
  %v82 = vld [vmem:[%s0 + $0x10] sm:$0xff]
  %v83 = vld [vmem:[%s0 + $0x18] sm:$0xff]
  %v84 = vld [vmem:[%s0 + $0x20] sm:$0xff]
  %v85 = vld [vmem:[%s0 + $0x28] sm:$0xff]
  %v86 = vld [vmem:[%s0 + $0x30] sm:$0xff]
  %v87 = vld [vmem:[%s0 + $0x38] sm:$0xff]
  %v88 = vld [vmem:[%s0 + $0x40] sm:$0xff]
  %v89 = vld [vmem:[%s0 + $0x48] sm:$0xff]
  %v90 = vld [vmem:[%s0 + $0x50] sm:$0xff]
  %v91 = vld [vmem:[%s0 + $0x58] sm:$0xff]
  %v92 = vld [vmem:[%s0 + $0x60] sm:$0xff]
  %v93 = vld [vmem:[%s0 + $0x68] sm:$0xff]
  %v94 = vld [vmem:[%s0 + $0x70] sm:$0xff]
  %v95 = vld [vmem:[%s0 + $0x78] sm:$0xff]
  %v96 = vld [vmem:[%s0 + $0x80] sm:$0xff]
  %v97 = vld [vmem:[%s0 + $0x88] sm:$0xff]
  %v98 = vld [vmem:[%s0 + $0x90] sm:$0xff]
  %v99 = vld [vmem:[%s0 + $0x98] sm:$0xff]
  %v100 = vld [vmem:[%s0 + $0xa0] sm:$0xff]
  %v101 = vld [vmem:[%s0 + $0xa8] sm:$0xff]
  %v102 = vld [vmem:[%s0 + $0xb0] sm:$0xff]
  %v103 = vld [vmem:[%s0 + $0xb8] sm:$0xff]
  %v104 = vld [vmem:[%s0 + $0xc0] sm:$0xff]
  %v105 = vld [vmem:[%s0 + $0xc8] sm:$0xff]
  %v106 = vld [vmem:[%s0 + $0xd0] sm:$0xff]
  %v107 = vld [vmem:[%s0 + $0xd8] sm:$0xff]
  %v108 = vld [vmem:[%s0 + $0xe0] sm:$0xff]
  %v109 = vld [vmem:[%s0 + $0xe8] sm:$0xff]
  %v110 = vld [vmem:[%s0 + $0xf0] sm:$0xff]
  %v111 = vld [vmem:[%s0 + $0xf8] sm:$0xff]
  %v112 = vld [vmem:[%s0 + $0x100] sm:$0xff]
  %v113 = vld [vmem:[%s0 + $0x108] sm:$0xff]
  %v114 = vld [vmem:[%s0 + $0x110] sm:$0xff]
  %v115 = vld [vmem:[%s0 + $0x118] sm:$0xff]
  %v116 = vld [vmem:[%s0 + $0x120] sm:$0xff]
  %v117 = vld [vmem:[%s0 + $0x128] sm:$0xff]
  %v118 = vld [vmem:[%s0 + $0x130] sm:$0xff]
  %v119 = vld [vmem:[%s0 + $0x138] sm:$0xff]
  %v120 = vld [vmem:[%s0 + $0x140] sm:$0xff]
  %v121 = vld [vmem:[%s0 + $0x148] sm:$0xff]
  %v122 = vld [vmem:[%s0 + $0x150] sm:$0xff]
  %v123 = vld [vmem:[%s0 + $0x158] sm:$0xff]
  %v124 = vld [vmem:[%s0 + $0x160] sm:$0xff]
  %v125 = vld [vmem:[%s0 + $0x168] sm:$0xff]
  %v126 = vld [vmem:[%s0 + $0x170] sm:$0xff]
  %v127 = vld [vmem:[%s0 + $0x178] sm:$0xff]
  %v128 = vld [vmem:[%s0 + $0x180] sm:$0xff]
  %v129 = vld [vmem:[%s0 + $0x188] sm:$0xff]
  %v130 = vld [vmem:[%s0 + $0x190] sm:$0xff]
  %v131 = vld [vmem:[%s0 + $0x198] sm:$0xff]
  %v132 = vld [vmem:[%s0 + $0x1a0] sm:$0xff]
  %v133 = vld [vmem:[%s0 + $0x1a8] sm:$0xff]
  %v134 = vld [vmem:[%s0 + $0x1b0] sm:$0xff]
  %v135 = vld [vmem:[%s0 + $0x1b8] sm:$0xff]
  %v136 = vld [vmem:[%s0 + $0x1c0] sm:$0xff]
  %v137 = vld [vmem:[%s0 + $0x1c8] sm:$0xff]
  %v138 = vld [vmem:[%s0 + $0x1d0] sm:$0xff]
  %v139 = vld [vmem:[%s0 + $0x1d8] sm:$0xff]
  %v140 = vld [vmem:[%s0 + $0x1e0] sm:$0xff]
  %v141 = vld [vmem:[%s0 + $0x1e8] sm:$0xff]
  %v142 = vld [vmem:[%s0 + $0x1f0] sm:$0xff]
  %v143 = vld [vmem:[%s0 + $0x1f8] sm:$0xff]
  %v144 = vld [vmem:[%s2] sm:$0xff]
  %v145 = vld [vmem:[%s2 + $0x8] sm:$0xff]
  %v146 = vld [vmem:[%s2 + $0x10] sm:$0xff]
  %v147 = vld [vmem:[%s2 + $0x18] sm:$0xff]
  %v148 = vld [vmem:[%s3] sm:$0x1]
  %v150 = vperm.slane %v148, 0
  %vm152 = vcmask 261120
  %v154 = vsel %vm152, %v80, 0
  %v157 = vsel %vm152, %v81, 0
  %v160 = vsel %vm152, %v82, 0
  %v163 = vsel %vm152, %v83, 0
  %v166 = vsel %vm152, %v84, 0
  %v169 = vsel %vm152, %v85, 0
  %v172 = vsel %vm152, %v86, 0
  %v175 = vsel %vm152, %v87, 0
  %v178 = vsel %vm152, %v88, 0
  %v181 = vsel %vm152, %v89, 0
  %v184 = vsel %vm152, %v90, 0
  %v187 = vsel %vm152, %v91, 0
  %v190 = vsel %vm152, %v92, 0
  %v193 = vsel %vm152, %v93, 0
  %v196 = vsel %vm152, %v94, 0
  %v199 = vsel %vm152, %v95, 0
  %v202 = vsel %vm152, %v96, 0
  %v205 = vsel %vm152, %v97, 0
  %v208 = vsel %vm152, %v98, 0
  %v211 = vsel %vm152, %v99, 0
  %v214 = vsel %vm152, %v100, 0
  %v217 = vsel %vm152, %v101, 0
  %v220 = vsel %vm152, %v102, 0
  %v223 = vsel %vm152, %v103, 0
  %v226 = vsel %vm152, %v104, 0
  %v229 = vsel %vm152, %v105, 0
  %v232 = vsel %vm152, %v106, 0
  %v235 = vsel %vm152, %v107, 0
  %v238 = vsel %vm152, %v108, 0
  %v241 = vsel %vm152, %v109, 0
  %v244 = vsel %vm152, %v110, 0
  %v247 = vsel %vm152, %v111, 0
  %v250 = vsel %vm152, %v112, 0
  %v253 = vsel %vm152, %v113, 0
  %v256 = vsel %vm152, %v114, 0
  %v259 = vsel %vm152, %v115, 0
  %v262 = vsel %vm152, %v116, 0
  %v265 = vsel %vm152, %v117, 0
  %v268 = vsel %vm152, %v118, 0
  %v271 = vsel %vm152, %v119, 0
  %v274 = vsel %vm152, %v120, 0
  %v277 = vsel %vm152, %v121, 0
  %v280 = vsel %vm152, %v122, 0
  %v283 = vsel %vm152, %v123, 0
  %v286 = vsel %vm152, %v124, 0
  %v289 = vsel %vm152, %v125, 0
  %v292 = vsel %vm152, %v126, 0
  %v295 = vsel %vm152, %v127, 0
  %v298 = vsel %vm152, %v128, 0
  %v301 = vsel %vm152, %v129, 0
  %v304 = vsel %vm152, %v130, 0
  %v307 = vsel %vm152, %v131, 0
  %v310 = vsel %vm152, %v132, 0
  %v313 = vsel %vm152, %v133, 0
  %v316 = vsel %vm152, %v134, 0
  %v319 = vsel %vm152, %v135, 0
  %v322 = vsel %vm152, %v136, 0
  %v325 = vsel %vm152, %v137, 0
  %v328 = vsel %vm152, %v138, 0
  %v331 = vsel %vm152, %v139, 0
  %v334 = vsel %vm152, %v140, 0
  %v337 = vsel %vm152, %v141, 0
  %v340 = vsel %vm152, %v142, 0
  %v343 = vsel %vm152, %v143, 0
  %345 = vmatpush.msra.mxu0 0.0
  %346 = vmatpush.msra.mxu0 0.0
  %347 = vmatpush.msra.mxu0 0.0
  %348 = vmatpush.msra.mxu0 0.0
  %349 = vmatpush.msra.mxu0 0.0
  %350 = vmatpush.msra.mxu0 0.0
  %351 = vmatpush.msra.mxu0 0.0
  %352 = vmatpush.msra.mxu0 0.0
  %353 = vmatpush.msra.mxu0 0.0
  %354 = vmatpush.msra.mxu0 0.0
  %355 = vmatpush.msra.mxu0 0.0
  %356 = vmatpush.msra.mxu0 0.0
  %357 = vmatpush.msra.mxu0 %v147
  %358 = vmatpush.msra.mxu0 %v146
  %359 = vmatpush.msra.mxu0 %v145
  %360 = vmatpush.msra.mxu0 %v144
  %361 = vmatmul.f32.gmra.mxu0 %v154
  %v362 = vpop.f32.mrf.mxu0
  %v363 = vadd.f32 %v150, %v362
  %364 = vmatmul.f32.gmra.mxu0 %v157
  %v365 = vpop.f32.mrf.mxu0
  %v366 = vadd.f32 %v150, %v365
  %367 = vmatmul.f32.gmra.mxu0 %v160
  %v368 = vpop.f32.mrf.mxu0
  %v369 = vadd.f32 %v150, %v368
  %370 = vmatmul.f32.gmra.mxu0 %v163
  %v371 = vpop.f32.mrf.mxu0
  %v372 = vadd.f32 %v150, %v371
  %373 = vmatmul.f32.gmra.mxu0 %v166
  %v374 = vpop.f32.mrf.mxu0
  %v375 = vadd.f32 %v150, %v374
  %376 = vmatmul.f32.gmra.mxu0 %v169
  %v377 = vpop.f32.mrf.mxu0
  %v378 = vadd.f32 %v150, %v377
  %379 = vmatmul.f32.gmra.mxu0 %v172
  %v380 = vpop.f32.mrf.mxu0
  %v381 = vadd.f32 %v150, %v380
  %382 = vmatmul.f32.gmra.mxu0 %v175
  %v383 = vpop.f32.mrf.mxu0
  %v384 = vadd.f32 %v150, %v383
  %385 = vmatmul.f32.gmra.mxu0 %v178
  %v386 = vpop.f32.mrf.mxu0
  %v387 = vadd.f32 %v150, %v386
  %388 = vmatmul.f32.gmra.mxu0 %v181
  %v389 = vpop.f32.mrf.mxu0
  %v390 = vadd.f32 %v150, %v389
  %391 = vmatmul.f32.gmra.mxu0 %v184
  %v392 = vpop.f32.mrf.mxu0
  %v393 = vadd.f32 %v150, %v392
  %394 = vmatmul.f32.gmra.mxu0 %v187
  %v395 = vpop.f32.mrf.mxu0
  %v396 = vadd.f32 %v150, %v395
  %397 = vmatmul.f32.gmra.mxu0 %v190
  %v398 = vpop.f32.mrf.mxu0
  %v399 = vadd.f32 %v150, %v398
  %400 = vmatmul.f32.gmra.mxu0 %v193
  %v401 = vpop.f32.mrf.mxu0
  %v402 = vadd.f32 %v150, %v401
  %403 = vmatmul.f32.gmra.mxu0 %v196
  %v404 = vpop.f32.mrf.mxu0
  %v405 = vadd.f32 %v150, %v404
  %406 = vmatmul.f32.gmra.mxu0 %v199
  %v407 = vpop.f32.mrf.mxu0
  %v408 = vadd.f32 %v150, %v407
  %409 = vmatmul.f32.gmra.mxu0 %v202
  %v410 = vpop.f32.mrf.mxu0
  %v411 = vadd.f32 %v150, %v410
  %412 = vmatmul.f32.gmra.mxu0 %v205
  %v413 = vpop.f32.mrf.mxu0
  %v414 = vadd.f32 %v150, %v413
  %415 = vmatmul.f32.gmra.mxu0 %v208
  %v416 = vpop.f32.mrf.mxu0
  %v417 = vadd.f32 %v150, %v416
  %418 = vmatmul.f32.gmra.mxu0 %v211
  %v419 = vpop.f32.mrf.mxu0
  %v420 = vadd.f32 %v150, %v419
  %421 = vmatmul.f32.gmra.mxu0 %v214
  %v422 = vpop.f32.mrf.mxu0
  %v423 = vadd.f32 %v150, %v422
  %424 = vmatmul.f32.gmra.mxu0 %v217
  %v425 = vpop.f32.mrf.mxu0
  %v426 = vadd.f32 %v150, %v425
  %427 = vmatmul.f32.gmra.mxu0 %v220
  %v428 = vpop.f32.mrf.mxu0
  %v429 = vadd.f32 %v150, %v428
  %430 = vmatmul.f32.gmra.mxu0 %v223
  %v431 = vpop.f32.mrf.mxu0
  %v432 = vadd.f32 %v150, %v431
  %433 = vmatmul.f32.gmra.mxu0 %v226
  %v434 = vpop.f32.mrf.mxu0
  %v435 = vadd.f32 %v150, %v434
  %436 = vmatmul.f32.gmra.mxu0 %v229
  %v437 = vpop.f32.mrf.mxu0
  %v438 = vadd.f32 %v150, %v437
  %439 = vmatmul.f32.gmra.mxu0 %v232
  %v440 = vpop.f32.mrf.mxu0
  %v441 = vadd.f32 %v150, %v440
  %442 = vmatmul.f32.gmra.mxu0 %v235
  %v443 = vpop.f32.mrf.mxu0
  %v444 = vadd.f32 %v150, %v443
  %445 = vmatmul.f32.gmra.mxu0 %v238
  %v446 = vpop.f32.mrf.mxu0
  %v447 = vadd.f32 %v150, %v446
  %448 = vmatmul.f32.gmra.mxu0 %v241
  %v449 = vpop.f32.mrf.mxu0
  %v450 = vadd.f32 %v150, %v449
  %451 = vmatmul.f32.gmra.mxu0 %v244
  %v452 = vpop.f32.mrf.mxu0
  %v453 = vadd.f32 %v150, %v452
  %454 = vmatmul.f32.gmra.mxu0 %v247
  %v455 = vpop.f32.mrf.mxu0
  %v456 = vadd.f32 %v150, %v455
  %457 = vmatmul.f32.gmra.mxu0 %v250
  %v458 = vpop.f32.mrf.mxu0
  %v459 = vadd.f32 %v150, %v458
  %460 = vmatmul.f32.gmra.mxu0 %v253
  %v461 = vpop.f32.mrf.mxu0
  %v462 = vadd.f32 %v150, %v461
  %463 = vmatmul.f32.gmra.mxu0 %v256
  %v464 = vpop.f32.mrf.mxu0
  %v465 = vadd.f32 %v150, %v464
  %466 = vmatmul.f32.gmra.mxu0 %v259
  %v467 = vpop.f32.mrf.mxu0
  %v468 = vadd.f32 %v150, %v467
  %469 = vmatmul.f32.gmra.mxu0 %v262
  %v470 = vpop.f32.mrf.mxu0
  %v471 = vadd.f32 %v150, %v470
  %472 = vmatmul.f32.gmra.mxu0 %v265
  %v473 = vpop.f32.mrf.mxu0
  %v474 = vadd.f32 %v150, %v473
  %475 = vmatmul.f32.gmra.mxu0 %v268
  %v476 = vpop.f32.mrf.mxu0
  %v477 = vadd.f32 %v150, %v476
  %478 = vmatmul.f32.gmra.mxu0 %v271
  %v479 = vpop.f32.mrf.mxu0
  %v480 = vadd.f32 %v150, %v479
  %481 = vmatmul.f32.gmra.mxu0 %v274
  %v482 = vpop.f32.mrf.mxu0
  %v483 = vadd.f32 %v150, %v482
  %484 = vmatmul.f32.gmra.mxu0 %v277
  %v485 = vpop.f32.mrf.mxu0
  %v486 = vadd.f32 %v150, %v485
  %487 = vmatmul.f32.gmra.mxu0 %v280
  %v488 = vpop.f32.mrf.mxu0
  %v489 = vadd.f32 %v150, %v488
  %490 = vmatmul.f32.gmra.mxu0 %v283
  %v491 = vpop.f32.mrf.mxu0
  %v492 = vadd.f32 %v150, %v491
  %493 = vmatmul.f32.gmra.mxu0 %v286
  %v494 = vpop.f32.mrf.mxu0
  %v495 = vadd.f32 %v150, %v494
  %496 = vmatmul.f32.gmra.mxu0 %v289
  %v497 = vpop.f32.mrf.mxu0
  %v498 = vadd.f32 %v150, %v497
  %499 = vmatmul.f32.gmra.mxu0 %v292
  %v500 = vpop.f32.mrf.mxu0
  %v501 = vadd.f32 %v150, %v500
  %502 = vmatmul.f32.gmra.mxu0 %v295
  %v503 = vpop.f32.mrf.mxu0
  %v504 = vadd.f32 %v150, %v503
  %505 = vmatmul.f32.gmra.mxu0 %v298
  %v506 = vpop.f32.mrf.mxu0
  %v507 = vadd.f32 %v150, %v506
  %508 = vmatmul.f32.gmra.mxu0 %v301
  %v509 = vpop.f32.mrf.mxu0
  %v510 = vadd.f32 %v150, %v509
  %511 = vmatmul.f32.gmra.mxu0 %v304
  %v512 = vpop.f32.mrf.mxu0
  %v513 = vadd.f32 %v150, %v512
  %514 = vmatmul.f32.gmra.mxu0 %v307
  %v515 = vpop.f32.mrf.mxu0
  %v516 = vadd.f32 %v150, %v515
  %517 = vmatmul.f32.gmra.mxu0 %v310
  %v518 = vpop.f32.mrf.mxu0
  %v519 = vadd.f32 %v150, %v518
  %520 = vmatmul.f32.gmra.mxu0 %v313
  %v521 = vpop.f32.mrf.mxu0
  %v522 = vadd.f32 %v150, %v521
  %523 = vmatmul.f32.gmra.mxu0 %v316
  %v524 = vpop.f32.mrf.mxu0
  %v525 = vadd.f32 %v150, %v524
  %526 = vmatmul.f32.gmra.mxu0 %v319
  %v527 = vpop.f32.mrf.mxu0
  %v528 = vadd.f32 %v150, %v527
  %529 = vmatmul.f32.gmra.mxu0 %v322
  %v530 = vpop.f32.mrf.mxu0
  %v531 = vadd.f32 %v150, %v530
  %532 = vmatmul.f32.gmra.mxu0 %v325
  %v533 = vpop.f32.mrf.mxu0
  %v534 = vadd.f32 %v150, %v533
  %535 = vmatmul.f32.gmra.mxu0 %v328
  %v536 = vpop.f32.mrf.mxu0
  %v537 = vadd.f32 %v150, %v536
  %538 = vmatmul.f32.gmra.mxu0 %v331
  %v539 = vpop.f32.mrf.mxu0
  %v540 = vadd.f32 %v150, %v539
  %541 = vmatmul.f32.gmra.mxu0 %v334
  %v542 = vpop.f32.mrf.mxu0
  %v543 = vadd.f32 %v150, %v542
  %544 = vmatmul.f32.gmra.mxu0 %v337
  %v545 = vpop.f32.mrf.mxu0
  %v546 = vadd.f32 %v150, %v545
  %547 = vmatmul.f32.gmra.mxu0 %v340
  %v548 = vpop.f32.mrf.mxu0
  %v549 = vadd.f32 %v150, %v548
  %550 = vmatmul.f32.gmra.mxu0 %v343
  %v551 = vpop.f32.mrf.mxu0
  %v552 = vadd.f32 %v150, %v551
  %553 = vdwg.mxu0
  %v554 = vmax.f32 %v363, 0.0
  %v555 = vmax.f32 %v366, 0.0
  %v556 = vmax.f32 %v369, 0.0
  %v557 = vmax.f32 %v372, 0.0
  %v558 = vmax.f32 %v375, 0.0
  %v559 = vmax.f32 %v378, 0.0
  %v560 = vmax.f32 %v381, 0.0
  %v561 = vmax.f32 %v384, 0.0
  %v562 = vmax.f32 %v387, 0.0
  %v563 = vmax.f32 %v390, 0.0
  %v564 = vmax.f32 %v393, 0.0
  %v565 = vmax.f32 %v396, 0.0
  %v566 = vmax.f32 %v399, 0.0
  %v567 = vmax.f32 %v402, 0.0
  %v568 = vmax.f32 %v405, 0.0
  %v569 = vmax.f32 %v408, 0.0
  %v570 = vmax.f32 %v411, 0.0
  %v571 = vmax.f32 %v414, 0.0
  %v572 = vmax.f32 %v417, 0.0
  %v573 = vmax.f32 %v420, 0.0
  %v574 = vmax.f32 %v423, 0.0
  %v575 = vmax.f32 %v426, 0.0
  %v576 = vmax.f32 %v429, 0.0
  %v577 = vmax.f32 %v432, 0.0
  %v578 = vmax.f32 %v435, 0.0
  %v579 = vmax.f32 %v438, 0.0
  %v580 = vmax.f32 %v441, 0.0
  %v581 = vmax.f32 %v444, 0.0
  %v582 = vmax.f32 %v447, 0.0
  %v583 = vmax.f32 %v450, 0.0
  %v584 = vmax.f32 %v453, 0.0
  %v585 = vmax.f32 %v456, 0.0
  %v586 = vmax.f32 %v459, 0.0
  %v587 = vmax.f32 %v462, 0.0
  %v588 = vmax.f32 %v465, 0.0
  %v589 = vmax.f32 %v468, 0.0
  %v590 = vmax.f32 %v471, 0.0
  %v591 = vmax.f32 %v474, 0.0
  %v592 = vmax.f32 %v477, 0.0
  %v593 = vmax.f32 %v480, 0.0
  %v594 = vmax.f32 %v483, 0.0
  %v595 = vmax.f32 %v486, 0.0
  %v596 = vmax.f32 %v489, 0.0
  %v597 = vmax.f32 %v492, 0.0
  %v598 = vmax.f32 %v495, 0.0
  %v599 = vmax.f32 %v498, 0.0
  %v600 = vmax.f32 %v501, 0.0
  %v601 = vmax.f32 %v504, 0.0
  %v602 = vmax.f32 %v507, 0.0
  %v603 = vmax.f32 %v510, 0.0
  %v604 = vmax.f32 %v513, 0.0
  %v605 = vmax.f32 %v516, 0.0
  %v606 = vmax.f32 %v519, 0.0
  %v607 = vmax.f32 %v522, 0.0
  %v608 = vmax.f32 %v525, 0.0
  %v609 = vmax.f32 %v528, 0.0
  %v610 = vmax.f32 %v531, 0.0
  %v611 = vmax.f32 %v534, 0.0
  %v612 = vmax.f32 %v537, 0.0
  %v613 = vmax.f32 %v540, 0.0
  %v614 = vmax.f32 %v543, 0.0
  %v615 = vmax.f32 %v546, 0.0
  %v616 = vmax.f32 %v549, 0.0
  %v617 = vmax.f32 %v552, 0.0
  %v618 = vld [vmem:[%s1] sm:$0xff]
  %620 = vst [vmem:[#allocation1] ss:$4 sm:$0xff] %v618
  %v621 = vld.sshfl [vmem:[#allocation1] sm:$0xff pattern:$0x73625140]
  %v622 = vld.sshfl [vmem:[#allocation1 + $0x8] sm:$0xff pattern:$0x73625140]
  %v623 = vld.sshfl [vmem:[#allocation1 + $0x10] sm:$0xff pattern:$0x73625140]
  %v624 = vld.sshfl [vmem:[#allocation1 + $0x18] sm:$0xff pattern:$0x73625140]
  %629 = vmatpush.msra.mxu0 %v569
  %630 = vmatpush.msra.mxu0 %v568
  %631 = vmatpush.msra.mxu0 %v567
  %632 = vmatpush.msra.mxu0 %v566
  %633 = vmatpush.msra.mxu0 %v565
  %634 = vmatpush.msra.mxu0 %v564
  %635 = vmatpush.msra.mxu0 %v563
  %636 = vmatpush.msra.mxu0 %v562
  %637 = vmatpush.msra.mxu0 %v561
  %638 = vmatpush.msra.mxu0 %v560
  %639 = vmatpush.msra.mxu0 %v559
  %640 = vmatpush.msra.mxu0 %v558
  %641 = vmatpush.msra.mxu0 %v557
  %642 = vmatpush.msra.mxu0 %v556
  %643 = vmatpush.msra.mxu0 %v555
  %644 = vmatpush.msra.mxu0 %v554
  %645 = vmatmul.f32.gmra.mxu0 %v621
  %v646 = vpop.f32.mrf.mxu0
  %v647 = vadd.f32 0.0, %v646
  %648 = vdwg.mxu0
  %649 = vmatpush.msra.mxu0 %v585
  %650 = vmatpush.msra.mxu0 %v584
  %651 = vmatpush.msra.mxu0 %v583
  %652 = vmatpush.msra.mxu0 %v582
  %653 = vmatpush.msra.mxu0 %v581
  %654 = vmatpush.msra.mxu0 %v580
  %655 = vmatpush.msra.mxu0 %v579
  %656 = vmatpush.msra.mxu0 %v578
  %657 = vmatpush.msra.mxu0 %v577
  %658 = vmatpush.msra.mxu0 %v576
  %659 = vmatpush.msra.mxu0 %v575
  %660 = vmatpush.msra.mxu0 %v574
  %661 = vmatpush.msra.mxu0 %v573
  %662 = vmatpush.msra.mxu0 %v572
  %663 = vmatpush.msra.mxu0 %v571
  %664 = vmatpush.msra.mxu0 %v570
  %665 = vmatmul.f32.gmra.mxu0 %v622
  %v666 = vpop.f32.mrf.mxu0
  %v667 = vadd.f32 %v647, %v666
  %668 = vdwg.mxu0
  %669 = vmatpush.msra.mxu0 %v601
  %670 = vmatpush.msra.mxu0 %v600
  %671 = vmatpush.msra.mxu0 %v599
  %672 = vmatpush.msra.mxu0 %v598
  %673 = vmatpush.msra.mxu0 %v597
  %674 = vmatpush.msra.mxu0 %v596
  %675 = vmatpush.msra.mxu0 %v595
  %676 = vmatpush.msra.mxu0 %v594
  %677 = vmatpush.msra.mxu0 %v593
  %678 = vmatpush.msra.mxu0 %v592
  %679 = vmatpush.msra.mxu0 %v591
  %680 = vmatpush.msra.mxu0 %v590
  %681 = vmatpush.msra.mxu0 %v589
  %682 = vmatpush.msra.mxu0 %v588
  %683 = vmatpush.msra.mxu0 %v587
  %684 = vmatpush.msra.mxu0 %v586
  %685 = vmatmul.f32.gmra.mxu0 %v623
  %v686 = vpop.f32.mrf.mxu0
  %v687 = vadd.f32 %v667, %v686
  %688 = vdwg.mxu0
  %689 = vmatpush.msra.mxu0 %v617
  %690 = vmatpush.msra.mxu0 %v616
  %691 = vmatpush.msra.mxu0 %v615
  %692 = vmatpush.msra.mxu0 %v614
  %693 = vmatpush.msra.mxu0 %v613
  %694 = vmatpush.msra.mxu0 %v612
  %695 = vmatpush.msra.mxu0 %v611
  %696 = vmatpush.msra.mxu0 %v610
  %697 = vmatpush.msra.mxu0 %v609
  %698 = vmatpush.msra.mxu0 %v608
  %699 = vmatpush.msra.mxu0 %v607
  %700 = vmatpush.msra.mxu0 %v606
  %701 = vmatpush.msra.mxu0 %v605
  %702 = vmatpush.msra.mxu0 %v604
  %703 = vmatpush.msra.mxu0 %v603
  %704 = vmatpush.msra.mxu0 %v602
  %705 = vmatmul.f32.gmra.mxu0 %v624
  %v706 = vpop.f32.mrf.mxu0
  %v707 = vadd.f32 %v687, %v706
  %708 = vdwg.mxu0
  %v709 = vld [vmem:[%s4] sm:$0xff]
  %v710 = vld [vmem:[%s4 + $0x8] sm:$0xff]
  %v711 = vld [vmem:[%s4 + $0x10] sm:$0xff]
  %v712 = vld [vmem:[%s4 + $0x18] sm:$0xff]
  %v713 = vld [vmem:[%s4 + $0x20] sm:$0xff]
  %v714 = vld [vmem:[%s4 + $0x28] sm:$0xff]
  %v715 = vld [vmem:[%s4 + $0x30] sm:$0xff]
  %v716 = vld [vmem:[%s4 + $0x38] sm:$0xff]
  %v717 = vld [vmem:[%s4 + $0x40] sm:$0xff]
  %v718 = vld [vmem:[%s4 + $0x48] sm:$0xff]
  %v719 = vld [vmem:[%s4 + $0x50] sm:$0xff]
  %v720 = vld [vmem:[%s4 + $0x58] sm:$0xff]
  %v721 = vld [vmem:[%s4 + $0x60] sm:$0xff]
  %v722 = vld [vmem:[%s4 + $0x68] sm:$0xff]
  %v723 = vld [vmem:[%s4 + $0x70] sm:$0xff]
  %v724 = vld [vmem:[%s4 + $0x78] sm:$0xff]
  %v725 = vld [vmem:[%s5] sm:$0x1]
  %v727 = vperm.slane %v725, 0
  %729 = vmatpush.msra.mxu0 %v724
  %730 = vmatpush.msra.mxu0 %v723
  %731 = vmatpush.msra.mxu0 %v722
  %732 = vmatpush.msra.mxu0 %v721
  %733 = vmatpush.msra.mxu0 %v720
  %734 = vmatpush.msra.mxu0 %v719
  %735 = vmatpush.msra.mxu0 %v718
  %736 = vmatpush.msra.mxu0 %v717
  %737 = vmatpush.msra.mxu0 %v716
  %738 = vmatpush.msra.mxu0 %v715
  %739 = vmatpush.msra.mxu0 %v714
  %740 = vmatpush.msra.mxu0 %v713
  %741 = vmatpush.msra.mxu0 %v712
  %742 = vmatpush.msra.mxu0 %v711
  %743 = vmatpush.msra.mxu0 %v710
  %744 = vmatpush.msra.mxu0 %v709
  %745 = vmatmul.f32.gmra.mxu0 %v707
  %v746 = vpop.f32.mrf.mxu0
  %v747 = vadd.f32 %v727, %v746
  %748 = vdwg.mxu0
  %749 = vst [vmem:[%s24] sm:$0x3] %v747
  %v750 = vld [vmem:[%s6] sm:$0xff]
  %v751 = vld [vmem:[%s6 + $0x8] sm:$0xff]
  %v752 = vld [vmem:[%s6 + $0x10] sm:$0xff]
  %v753 = vld [vmem:[%s6 + $0x18] sm:$0xff]
  %v754 = vld [vmem:[%s6 + $0x20] sm:$0xff]
  %v755 = vld [vmem:[%s6 + $0x28] sm:$0xff]
  %v756 = vld [vmem:[%s6 + $0x30] sm:$0xff]
  %v757 = vld [vmem:[%s6 + $0x38] sm:$0xff]
  %758 = vmatpush.xpose.msra.mxu0 0.0
  %759 = vmatpush.xpose.msra.mxu0 0.0
  %760 = vmatpush.xpose.msra.mxu0 0.0
  %761 = vmatpush.xpose.msra.mxu0 0.0
  %762 = vmatpush.xpose.msra.mxu0 0.0
  %763 = vmatpush.xpose.msra.mxu0 0.0
  %764 = vmatpush.xpose.msra.mxu0 0.0
  %765 = vmatpush.xpose.msra.mxu0 0.0
  %766 = vmatpush.xpose.msra.mxu0 0.0
  %767 = vmatpush.xpose.msra.mxu0 0.0
  %768 = vmatpush.xpose.msra.mxu0 0.0
  %769 = vmatpush.xpose.msra.mxu0 0.0
  %770 = vmatpush.xpose.msra.mxu0 0.0
  %771 = vmatpush.xpose.msra.mxu0 0.0
  %772 = vmatpush.xpose.msra.mxu0 0.0
  %773 = vmatpush.xpose.msra.mxu0 %v747
  %774 = vmatmul.f32.gmra.mxu0 %v750
  %v775 = vpop.f32.mrf.mxu0
  %v776 = vadd.f32 0.0, %v775
  %777 = vmatmul.f32.gmra.mxu0 %v751
  %v778 = vpop.f32.mrf.mxu0
  %v779 = vadd.f32 0.0, %v778
  %780 = vmatmul.f32.gmra.mxu0 %v752
  %v781 = vpop.f32.mrf.mxu0
  %v782 = vadd.f32 0.0, %v781
  %783 = vmatmul.f32.gmra.mxu0 %v753
  %v784 = vpop.f32.mrf.mxu0
  %v785 = vadd.f32 0.0, %v784
  %786 = vmatmul.f32.gmra.mxu0 %v754
  %v787 = vpop.f32.mrf.mxu0
  %v788 = vadd.f32 0.0, %v787
  %789 = vmatmul.f32.gmra.mxu0 %v755
  %v790 = vpop.f32.mrf.mxu0
  %v791 = vadd.f32 0.0, %v790
  %792 = vmatmul.f32.gmra.mxu0 %v756
  %v793 = vpop.f32.mrf.mxu0
  %v794 = vadd.f32 0.0, %v793
  %795 = vmatmul.f32.gmra.mxu0 %v757
  %v796 = vpop.f32.mrf.mxu0
  %v797 = vadd.f32 0.0, %v796
  %798 = vdwg.mxu0
  %v799 = vld [vmem:[%s7] sm:$0xff]
  %v800 = vld [vmem:[%s7 + $0x8] sm:$0xff]
  %v801 = vld [vmem:[%s7 + $0x10] sm:$0xff]
  %v802 = vld [vmem:[%s7 + $0x18] sm:$0xff]
  %v803 = vld [vmem:[%s7 + $0x20] sm:$0xff]
  %v804 = vld [vmem:[%s7 + $0x28] sm:$0xff]
  %v805 = vld [vmem:[%s7 + $0x30] sm:$0xff]
  %v806 = vld [vmem:[%s7 + $0x38] sm:$0xff]
  %807 = vmatpush.xpose.msra.mxu0 0.0
  %808 = vmatpush.xpose.msra.mxu0 0.0
  %809 = vmatpush.xpose.msra.mxu0 0.0
  %810 = vmatpush.xpose.msra.mxu0 0.0
  %811 = vmatpush.xpose.msra.mxu0 0.0
  %812 = vmatpush.xpose.msra.mxu0 0.0
  %813 = vmatpush.xpose.msra.mxu0 0.0
  %814 = vmatpush.xpose.msra.mxu0 0.0
  %815 = vmatpush.xpose.msra.mxu0 0.0
  %816 = vmatpush.xpose.msra.mxu0 0.0
  %817 = vmatpush.xpose.msra.mxu0 0.0
  %818 = vmatpush.xpose.msra.mxu0 0.0
  %819 = vmatpush.xpose.msra.mxu0 0.0
  %820 = vmatpush.xpose.msra.mxu0 0.0
  %821 = vmatpush.xpose.msra.mxu0 0.0
  %822 = vmatpush.xpose.msra.mxu0 %v747
  %823 = vmatmul.f32.gmra.mxu0 %v799
  %v824 = vpop.f32.mrf.mxu0
  %v825 = vadd.f32 0.0, %v824
  %826 = vmatmul.f32.gmra.mxu0 %v800
  %v827 = vpop.f32.mrf.mxu0
  %v828 = vadd.f32 0.0, %v827
  %829 = vmatmul.f32.gmra.mxu0 %v801
  %v830 = vpop.f32.mrf.mxu0
  %v831 = vadd.f32 0.0, %v830
  %832 = vmatmul.f32.gmra.mxu0 %v802
  %v833 = vpop.f32.mrf.mxu0
  %v834 = vadd.f32 0.0, %v833
  %835 = vmatmul.f32.gmra.mxu0 %v803
  %v836 = vpop.f32.mrf.mxu0
  %v837 = vadd.f32 0.0, %v836
  %838 = vmatmul.f32.gmra.mxu0 %v804
  %v839 = vpop.f32.mrf.mxu0
  %v840 = vadd.f32 0.0, %v839
  %841 = vmatmul.f32.gmra.mxu0 %v805
  %v842 = vpop.f32.mrf.mxu0
  %v843 = vadd.f32 0.0, %v842
  %844 = vmatmul.f32.gmra.mxu0 %v806
  %v845 = vpop.f32.mrf.mxu0
  %v846 = vadd.f32 0.0, %v845
  %847 = vdwg.mxu0
  %v848 = vld [vmem:[%s10] sm:$0xff]
  %v849 = vld [vmem:[%s10 + $0x8] sm:$0xff]
  %v850 = vld [vmem:[%s10 + $0x10] sm:$0xff]
  %v851 = vld [vmem:[%s10 + $0x18] sm:$0xff]
  %v852 = vld [vmem:[%s10 + $0x20] sm:$0xff]
  %v853 = vld [vmem:[%s10 + $0x28] sm:$0xff]
  %v854 = vld [vmem:[%s10 + $0x30] sm:$0xff]
  %v855 = vld [vmem:[%s10 + $0x38] sm:$0xff]
  %v856 = vld [vmem:[%s10 + $0x40] sm:$0xff]
  %v857 = vld [vmem:[%s10 + $0x48] sm:$0xff]
  %v858 = vld [vmem:[%s10 + $0x50] sm:$0xff]
  %v859 = vld [vmem:[%s10 + $0x58] sm:$0xff]
  %v860 = vld [vmem:[%s10 + $0x60] sm:$0xff]
  %v861 = vld [vmem:[%s10 + $0x68] sm:$0xff]
  %v862 = vld [vmem:[%s10 + $0x70] sm:$0xff]
  %v863 = vld [vmem:[%s10 + $0x78] sm:$0xff]
  %864 = vmatpush.msra.mxu0 %v863
  %865 = vmatpush.msra.mxu0 %v862
  %866 = vmatpush.msra.mxu0 %v861
  %867 = vmatpush.msra.mxu0 %v860
  %868 = vmatpush.msra.mxu0 %v859
  %869 = vmatpush.msra.mxu0 %v858
  %870 = vmatpush.msra.mxu0 %v857
  %871 = vmatpush.msra.mxu0 %v856
  %872 = vmatpush.msra.mxu0 %v855
  %873 = vmatpush.msra.mxu0 %v854
  %874 = vmatpush.msra.mxu0 %v853
  %875 = vmatpush.msra.mxu0 %v852
  %876 = vmatpush.msra.mxu0 %v851
  %877 = vmatpush.msra.mxu0 %v850
  %878 = vmatpush.msra.mxu0 %v849
  %879 = vmatpush.msra.mxu0 %v848
  %880 = vmatmul.f32.gmra.mxu0 %v707
  %v881 = vpop.f32.mrf.mxu0
  %v882 = vadd.f32 0.0, %v881
  %883 = vdwg.mxu0
  %v884 = vld [vmem:[%s12] sm:$0xff]
  %v885 = vld [vmem:[%s12 + $0x8] sm:$0xff]
  %v886 = vld [vmem:[%s12 + $0x10] sm:$0xff]
  %v887 = vld [vmem:[%s12 + $0x18] sm:$0xff]
  %v888 = vld [vmem:[%s12 + $0x20] sm:$0xff]
  %v889 = vld [vmem:[%s12 + $0x28] sm:$0xff]
  %v890 = vld [vmem:[%s12 + $0x30] sm:$0xff]
  %v891 = vld [vmem:[%s12 + $0x38] sm:$0xff]
  %v892 = vld [vmem:[%s17] sm:$0xff]
  %v893 = vld [vmem:[%s17 + $0x8] sm:$0xff]
  %v894 = vld [vmem:[%s17 + $0x10] sm:$0xff]
  %v895 = vld [vmem:[%s17 + $0x18] sm:$0xff]
  %v896 = vld [vmem:[%s17 + $0x20] sm:$0xff]
  %v897 = vld [vmem:[%s17 + $0x28] sm:$0xff]
  %v898 = vld [vmem:[%s17 + $0x30] sm:$0xff]
  %v899 = vld [vmem:[%s17 + $0x38] sm:$0xff]
  %v900 = vld [vmem:[%s8] sm:$0x1]
  %v901 = vld [vmem:[%s9] sm:$0x1]
  %903 = vset.pattern.permute.xlu0 0
  %904 = vperm.xlu0 %903, %v776
  %v905 = vpop.permute.xlu0 %904
  %908 = vset.pattern.permute.xlu0 0
  %909 = vperm.xlu0 %908, %v779
  %v910 = vpop.permute.xlu0 %909
  %913 = vset.pattern.permute.xlu0 0
  %914 = vperm.xlu0 %913, %v782
  %v915 = vpop.permute.xlu0 %914
  %918 = vset.pattern.permute.xlu0 0
  %919 = vperm.xlu0 %918, %v785
  %v920 = vpop.permute.xlu0 %919
  %923 = vset.pattern.permute.xlu0 0
  %924 = vperm.xlu0 %923, %v788
  %v925 = vpop.permute.xlu0 %924
  %928 = vset.pattern.permute.xlu0 0
  %929 = vperm.xlu0 %928, %v791
  %v930 = vpop.permute.xlu0 %929
  %933 = vset.pattern.permute.xlu0 0
  %934 = vperm.xlu0 %933, %v794
  %v935 = vpop.permute.xlu0 %934
  %938 = vset.pattern.permute.xlu0 0
  %939 = vperm.xlu0 %938, %v797
  %v940 = vpop.permute.xlu0 %939
  %v943 = vperm.slane %v900, 0
  %v945 = vmul.f32 %v905, %v943
  %v946 = vmul.f32 %v910, %v943
  %v947 = vmul.f32 %v915, %v943
  %v948 = vmul.f32 %v920, %v943
  %v949 = vmul.f32 %v925, %v943
  %v950 = vmul.f32 %v930, %v943
  %v951 = vmul.f32 %v935, %v943
  %v952 = vmul.f32 %v940, %v943
  %954 = vset.pattern.permute.xlu0 0
  %955 = vperm.xlu0 %954, %v825
  %v956 = vpop.permute.xlu0 %955
  %959 = vset.pattern.permute.xlu0 0
  %960 = vperm.xlu0 %959, %v828
  %v961 = vpop.permute.xlu0 %960
  %964 = vset.pattern.permute.xlu0 0
  %965 = vperm.xlu0 %964, %v831
  %v966 = vpop.permute.xlu0 %965
  %969 = vset.pattern.permute.xlu0 0
  %970 = vperm.xlu0 %969, %v834
  %v971 = vpop.permute.xlu0 %970
  %974 = vset.pattern.permute.xlu0 0
  %975 = vperm.xlu0 %974, %v837
  %v976 = vpop.permute.xlu0 %975
  %979 = vset.pattern.permute.xlu0 0
  %980 = vperm.xlu0 %979, %v840
  %v981 = vpop.permute.xlu0 %980
  %984 = vset.pattern.permute.xlu0 0
  %985 = vperm.xlu0 %984, %v843
  %v986 = vpop.permute.xlu0 %985
  %989 = vset.pattern.permute.xlu0 0
  %990 = vperm.xlu0 %989, %v846
  %v991 = vpop.permute.xlu0 %990
  %v994 = vperm.slane %v901, 0
  %v996 = vmul.f32 %v956, %v994
  %v997 = vmul.f32 %v961, %v994
  %v998 = vmul.f32 %v966, %v994
  %v999 = vmul.f32 %v971, %v994
  %v1000 = vmul.f32 %v976, %v994
  %v1001 = vmul.f32 %v981, %v994
  %v1002 = vmul.f32 %v986, %v994
  %v1003 = vmul.f32 %v991, %v994
  %v1004 = vadd.f32 %v945, %v996
  %v1005 = vadd.f32 %v946, %v997
  %v1006 = vadd.f32 %v947, %v998
  %v1007 = vadd.f32 %v948, %v999
  %v1008 = vadd.f32 %v949, %v1000
  %v1009 = vadd.f32 %v950, %v1001
  %v1010 = vadd.f32 %v951, %v1002
  %v1011 = vadd.f32 %v952, %v1003
  %v1012 = vperm.slane %v882, 0
  %v1013 = vadd.f32 %v1004, %v1012
  %v1014 = vadd.f32 %v1005, %v1012
  %v1015 = vadd.f32 %v1006, %v1012
  %v1016 = vadd.f32 %v1007, %v1012
  %v1017 = vadd.f32 %v1008, %v1012
  %v1018 = vadd.f32 %v1009, %v1012
  %v1019 = vadd.f32 %v1010, %v1012
  %v1020 = vadd.f32 %v1011, %v1012
  %v1021 = vld [vmem:[%s11] sm:$0x1]
  %v1023 = vperm.slane %v1021, 0
  %vm1025 = vcmask 523264
  %v1027 = vsel %vm1025, %v884, 0
  %v1030 = vsel %vm1025, %v885, 0
  %v1033 = vsel %vm1025, %v886, 0
  %v1036 = vsel %vm1025, %v887, 0
  %v1039 = vsel %vm1025, %v888, 0
  %v1042 = vsel %vm1025, %v889, 0
  %v1045 = vsel %vm1025, %v890, 0
  %v1048 = vsel %vm1025, %v891, 0
  %1050 = vmatpush.msra.mxu0 0.0
  %1051 = vmatpush.msra.mxu0 0.0
  %1052 = vmatpush.msra.mxu0 0.0
  %1053 = vmatpush.msra.mxu0 0.0
  %1054 = vmatpush.msra.mxu0 0.0
  %1055 = vmatpush.msra.mxu0 0.0
  %1056 = vmatpush.msra.mxu0 0.0
  %1057 = vmatpush.msra.mxu0 0.0
  %1058 = vmatpush.msra.mxu0 %v1020
  %1059 = vmatpush.msra.mxu0 %v1019
  %1060 = vmatpush.msra.mxu0 %v1018
  %1061 = vmatpush.msra.mxu0 %v1017
  %1062 = vmatpush.msra.mxu0 %v1016
  %1063 = vmatpush.msra.mxu0 %v1015
  %1064 = vmatpush.msra.mxu0 %v1014
  %1065 = vmatpush.msra.mxu0 %v1013
  %1066 = vmatmul.f32.gmra.mxu0 %v1027
  %v1067 = vpop.f32.mrf.mxu0
  %v1068 = vadd.f32 %v1023, %v1067
  %1069 = vmatmul.f32.gmra.mxu0 %v1030
  %v1070 = vpop.f32.mrf.mxu0
  %v1071 = vadd.f32 %v1023, %v1070
  %1072 = vmatmul.f32.gmra.mxu0 %v1033
  %v1073 = vpop.f32.mrf.mxu0
  %v1074 = vadd.f32 %v1023, %v1073
  %1075 = vmatmul.f32.gmra.mxu0 %v1036
  %v1076 = vpop.f32.mrf.mxu0
  %v1077 = vadd.f32 %v1023, %v1076
  %1078 = vmatmul.f32.gmra.mxu0 %v1039
  %v1079 = vpop.f32.mrf.mxu0
  %v1080 = vadd.f32 %v1023, %v1079
  %1081 = vmatmul.f32.gmra.mxu0 %v1042
  %v1082 = vpop.f32.mrf.mxu0
  %v1083 = vadd.f32 %v1023, %v1082
  %1084 = vmatmul.f32.gmra.mxu0 %v1045
  %v1085 = vpop.f32.mrf.mxu0
  %v1086 = vadd.f32 %v1023, %v1085
  %1087 = vmatmul.f32.gmra.mxu0 %v1048
  %v1088 = vpop.f32.mrf.mxu0
  %v1089 = vadd.f32 %v1023, %v1088
  %1090 = vdwg.mxu0
  %v1091 = vmax.f32 %v1068, 0.0
  %v1092 = vmax.f32 %v1071, 0.0
  %v1093 = vmax.f32 %v1074, 0.0
  %v1094 = vmax.f32 %v1077, 0.0
  %v1095 = vmax.f32 %v1080, 0.0
  %v1096 = vmax.f32 %v1083, 0.0
  %v1097 = vmax.f32 %v1086, 0.0
  %v1098 = vmax.f32 %v1089, 0.0
  %1099 = vmatpush.msra.mxu0 0.0
  %1100 = vmatpush.msra.mxu0 0.0
  %1101 = vmatpush.msra.mxu0 0.0
  %1102 = vmatpush.msra.mxu0 0.0
  %1103 = vmatpush.msra.mxu0 0.0
  %1104 = vmatpush.msra.mxu0 0.0
  %1105 = vmatpush.msra.mxu0 0.0
  %1106 = vmatpush.msra.mxu0 0.0
  %1107 = vmatpush.msra.mxu0 %v1098
  %1108 = vmatpush.msra.mxu0 %v1097
  %1109 = vmatpush.msra.mxu0 %v1096
  %1110 = vmatpush.msra.mxu0 %v1095
  %1111 = vmatpush.msra.mxu0 %v1094
  %1112 = vmatpush.msra.mxu0 %v1093
  %1113 = vmatpush.msra.mxu0 %v1092
  %1114 = vmatpush.msra.mxu0 %v1091
  %1115 = vmatmul.f32.gmra.mxu0 %v1027
  %v1116 = vpop.f32.mrf.mxu0
  %v1117 = vadd.f32 0.0, %v1116
  %1118 = vmatmul.f32.gmra.mxu0 %v1030
  %v1119 = vpop.f32.mrf.mxu0
  %v1120 = vadd.f32 0.0, %v1119
  %1121 = vmatmul.f32.gmra.mxu0 %v1033
  %v1122 = vpop.f32.mrf.mxu0
  %v1123 = vadd.f32 0.0, %v1122
  %1124 = vmatmul.f32.gmra.mxu0 %v1036
  %v1125 = vpop.f32.mrf.mxu0
  %v1126 = vadd.f32 0.0, %v1125
  %1127 = vmatmul.f32.gmra.mxu0 %v1039
  %v1128 = vpop.f32.mrf.mxu0
  %v1129 = vadd.f32 0.0, %v1128
  %1130 = vmatmul.f32.gmra.mxu0 %v1042
  %v1131 = vpop.f32.mrf.mxu0
  %v1132 = vadd.f32 0.0, %v1131
  %1133 = vmatmul.f32.gmra.mxu0 %v1045
  %v1134 = vpop.f32.mrf.mxu0
  %v1135 = vadd.f32 0.0, %v1134
  %1136 = vmatmul.f32.gmra.mxu0 %v1048
  %v1137 = vpop.f32.mrf.mxu0
  %v1138 = vadd.f32 0.0, %v1137
  %1139 = vdwg.mxu0
  %v1140 = vld [vmem:[%s13] sm:$0xff]
  %v1141 = vld [vmem:[%s13 + $0x8] sm:$0xff]
  %v1142 = vld [vmem:[%s13 + $0x10] sm:$0xff]
  %v1143 = vld [vmem:[%s13 + $0x18] sm:$0xff]
  %v1144 = vld [vmem:[%s13 + $0x20] sm:$0xff]
  %v1145 = vld [vmem:[%s13 + $0x28] sm:$0xff]
  %v1146 = vld [vmem:[%s13 + $0x30] sm:$0xff]
  %v1147 = vld [vmem:[%s13 + $0x38] sm:$0xff]
  %v1148 = vld [vmem:[%s13 + $0x40] sm:$0xff]
  %v1149 = vld [vmem:[%s13 + $0x48] sm:$0xff]
  %v1150 = vld [vmem:[%s13 + $0x50] sm:$0xff]
  %v1151 = vld [vmem:[%s13 + $0x58] sm:$0xff]
  %v1152 = vld [vmem:[%s13 + $0x60] sm:$0xff]
  %v1153 = vld [vmem:[%s13 + $0x68] sm:$0xff]
  %v1154 = vld [vmem:[%s13 + $0x70] sm:$0xff]
  %v1155 = vld [vmem:[%s13 + $0x78] sm:$0xff]
  %v1156 = vld [vmem:[%s14] sm:$0x1]
  %v1158 = vperm.slane %v1156, 0
  %1160 = vmatpush.msra.mxu0 %v1155
  %1161 = vmatpush.msra.mxu0 %v1154
  %1162 = vmatpush.msra.mxu0 %v1153
  %1163 = vmatpush.msra.mxu0 %v1152
  %1164 = vmatpush.msra.mxu0 %v1151
  %1165 = vmatpush.msra.mxu0 %v1150
  %1166 = vmatpush.msra.mxu0 %v1149
  %1167 = vmatpush.msra.mxu0 %v1148
  %1168 = vmatpush.msra.mxu0 %v1147
  %1169 = vmatpush.msra.mxu0 %v1146
  %1170 = vmatpush.msra.mxu0 %v1145
  %1171 = vmatpush.msra.mxu0 %v1144
  %1172 = vmatpush.msra.mxu0 %v1143
  %1173 = vmatpush.msra.mxu0 %v1142
  %1174 = vmatpush.msra.mxu0 %v1141
  %1175 = vmatpush.msra.mxu0 %v1140
  %1176 = vmatmul.f32.gmra.mxu0 %v1117
  %v1177 = vpop.f32.mrf.mxu0
  %v1178 = vadd.f32 %v1158, %v1177
  %1179 = vmatmul.f32.gmra.mxu0 %v1120
  %v1180 = vpop.f32.mrf.mxu0
  %v1181 = vadd.f32 %v1158, %v1180
  %1182 = vmatmul.f32.gmra.mxu0 %v1123
  %v1183 = vpop.f32.mrf.mxu0
  %v1184 = vadd.f32 %v1158, %v1183
  %1185 = vmatmul.f32.gmra.mxu0 %v1126
  %v1186 = vpop.f32.mrf.mxu0
  %v1187 = vadd.f32 %v1158, %v1186
  %1188 = vmatmul.f32.gmra.mxu0 %v1129
  %v1189 = vpop.f32.mrf.mxu0
  %v1190 = vadd.f32 %v1158, %v1189
  %1191 = vmatmul.f32.gmra.mxu0 %v1132
  %v1192 = vpop.f32.mrf.mxu0
  %v1193 = vadd.f32 %v1158, %v1192
  %1194 = vmatmul.f32.gmra.mxu0 %v1135
  %v1195 = vpop.f32.mrf.mxu0
  %v1196 = vadd.f32 %v1158, %v1195
  %1197 = vmatmul.f32.gmra.mxu0 %v1138
  %v1198 = vpop.f32.mrf.mxu0
  %v1199 = vadd.f32 %v1158, %v1198
  %1200 = vdwg.mxu0
  %v1201 = vmax.f32 %v1178, 0.0
  %v1202 = vmax.f32 %v1181, 0.0
  %v1203 = vmax.f32 %v1184, 0.0
  %v1204 = vmax.f32 %v1187, 0.0
  %v1205 = vmax.f32 %v1190, 0.0
  %v1206 = vmax.f32 %v1193, 0.0
  %v1207 = vmax.f32 %v1196, 0.0
  %v1208 = vmax.f32 %v1199, 0.0
  %1209 = vmatpush.msra.mxu0 0.0
  %1210 = vmatpush.msra.mxu0 0.0
  %1211 = vmatpush.msra.mxu0 0.0
  %1212 = vmatpush.msra.mxu0 0.0
  %1213 = vmatpush.msra.mxu0 0.0
  %1214 = vmatpush.msra.mxu0 0.0
  %1215 = vmatpush.msra.mxu0 0.0
  %1216 = vmatpush.msra.mxu0 0.0
  %1217 = vmatpush.msra.mxu0 %v1208
  %1218 = vmatpush.msra.mxu0 %v1207
  %1219 = vmatpush.msra.mxu0 %v1206
  %1220 = vmatpush.msra.mxu0 %v1205
  %1221 = vmatpush.msra.mxu0 %v1204
  %1222 = vmatpush.msra.mxu0 %v1203
  %1223 = vmatpush.msra.mxu0 %v1202
  %1224 = vmatpush.msra.mxu0 %v1201
  %1225 = vmatmul.f32.gmra.mxu0 %v1027
  %v1226 = vpop.f32.mrf.mxu0
  %v1227 = vadd.f32 0.0, %v1226
  %1228 = vmatmul.f32.gmra.mxu0 %v1030
  %v1229 = vpop.f32.mrf.mxu0
  %v1230 = vadd.f32 0.0, %v1229
  %1231 = vmatmul.f32.gmra.mxu0 %v1033
  %v1232 = vpop.f32.mrf.mxu0
  %v1233 = vadd.f32 0.0, %v1232
  %1234 = vmatmul.f32.gmra.mxu0 %v1036
  %v1235 = vpop.f32.mrf.mxu0
  %v1236 = vadd.f32 0.0, %v1235
  %1237 = vmatmul.f32.gmra.mxu0 %v1039
  %v1238 = vpop.f32.mrf.mxu0
  %v1239 = vadd.f32 0.0, %v1238
  %1240 = vmatmul.f32.gmra.mxu0 %v1042
  %v1241 = vpop.f32.mrf.mxu0
  %v1242 = vadd.f32 0.0, %v1241
  %1243 = vmatmul.f32.gmra.mxu0 %v1045
  %v1244 = vpop.f32.mrf.mxu0
  %v1245 = vadd.f32 0.0, %v1244
  %1246 = vmatmul.f32.gmra.mxu0 %v1048
  %v1247 = vpop.f32.mrf.mxu0
  %v1248 = vadd.f32 0.0, %v1247
  %1249 = vdwg.mxu0
  %v1250 = vld [vmem:[%s15] sm:$0xff]
  %v1251 = vld [vmem:[%s15 + $0x8] sm:$0xff]
  %v1252 = vld [vmem:[%s15 + $0x10] sm:$0xff]
  %v1253 = vld [vmem:[%s15 + $0x18] sm:$0xff]
  %v1254 = vld [vmem:[%s15 + $0x20] sm:$0xff]
  %v1255 = vld [vmem:[%s15 + $0x28] sm:$0xff]
  %v1256 = vld [vmem:[%s15 + $0x30] sm:$0xff]
  %v1257 = vld [vmem:[%s15 + $0x38] sm:$0xff]
  %v1258 = vld [vmem:[%s15 + $0x40] sm:$0xff]
  %v1259 = vld [vmem:[%s15 + $0x48] sm:$0xff]
  %v1260 = vld [vmem:[%s15 + $0x50] sm:$0xff]
  %v1261 = vld [vmem:[%s15 + $0x58] sm:$0xff]
  %v1262 = vld [vmem:[%s15 + $0x60] sm:$0xff]
  %v1263 = vld [vmem:[%s15 + $0x68] sm:$0xff]
  %v1264 = vld [vmem:[%s15 + $0x70] sm:$0xff]
  %v1265 = vld [vmem:[%s15 + $0x78] sm:$0xff]
  %v1266 = vld [vmem:[%s16] sm:$0x1]
  %v1268 = vperm.slane %v1266, 0
  %1270 = vmatpush.msra.mxu0 %v1265
  %1271 = vmatpush.msra.mxu0 %v1264
  %1272 = vmatpush.msra.mxu0 %v1263
  %1273 = vmatpush.msra.mxu0 %v1262
  %1274 = vmatpush.msra.mxu0 %v1261
  %1275 = vmatpush.msra.mxu0 %v1260
  %1276 = vmatpush.msra.mxu0 %v1259
  %1277 = vmatpush.msra.mxu0 %v1258
  %1278 = vmatpush.msra.mxu0 %v1257
  %1279 = vmatpush.msra.mxu0 %v1256
  %1280 = vmatpush.msra.mxu0 %v1255
  %1281 = vmatpush.msra.mxu0 %v1254
  %1282 = vmatpush.msra.mxu0 %v1253
  %1283 = vmatpush.msra.mxu0 %v1252
  %1284 = vmatpush.msra.mxu0 %v1251
  %1285 = vmatpush.msra.mxu0 %v1250
  %1286 = vmatmul.f32.gmra.mxu0 %v1227
  %v1287 = vpop.f32.mrf.mxu0
  %v1288 = vadd.f32 %v1268, %v1287
  %1289 = vmatmul.f32.gmra.mxu0 %v1230
  %v1290 = vpop.f32.mrf.mxu0
  %v1291 = vadd.f32 %v1268, %v1290
  %1292 = vmatmul.f32.gmra.mxu0 %v1233
  %v1293 = vpop.f32.mrf.mxu0
  %v1294 = vadd.f32 %v1268, %v1293
  %1295 = vmatmul.f32.gmra.mxu0 %v1236
  %v1296 = vpop.f32.mrf.mxu0
  %v1297 = vadd.f32 %v1268, %v1296
  %1298 = vmatmul.f32.gmra.mxu0 %v1239
  %v1299 = vpop.f32.mrf.mxu0
  %v1300 = vadd.f32 %v1268, %v1299
  %1301 = vmatmul.f32.gmra.mxu0 %v1242
  %v1302 = vpop.f32.mrf.mxu0
  %v1303 = vadd.f32 %v1268, %v1302
  %1304 = vmatmul.f32.gmra.mxu0 %v1245
  %v1305 = vpop.f32.mrf.mxu0
  %v1306 = vadd.f32 %v1268, %v1305
  %1307 = vmatmul.f32.gmra.mxu0 %v1248
  %v1308 = vpop.f32.mrf.mxu0
  %v1309 = vadd.f32 %v1268, %v1308
  %1310 = vdwg.mxu0
  %1311 = vst [vmem:[%s25] sm:$0xff] %v1288
  %1312 = vst [vmem:[%s25 + $0x8] sm:$0xff] %v1291
  %1313 = vst [vmem:[%s25 + $0x10] sm:$0xff] %v1294
  %1314 = vst [vmem:[%s25 + $0x18] sm:$0xff] %v1297
  %1315 = vst [vmem:[%s25 + $0x20] sm:$0xff] %v1300
  %1316 = vst [vmem:[%s25 + $0x28] sm:$0xff] %v1303
  %1317 = vst [vmem:[%s25 + $0x30] sm:$0xff] %v1306
  %1318 = vst [vmem:[%s25 + $0x38] sm:$0xff] %v1309
  %v1320 = vsel %vm1025, %v892, 0
  %v1323 = vsel %vm1025, %v893, 0
  %v1326 = vsel %vm1025, %v894, 0
  %v1329 = vsel %vm1025, %v895, 0
  %v1332 = vsel %vm1025, %v896, 0
  %v1335 = vsel %vm1025, %v897, 0
  %v1338 = vsel %vm1025, %v898, 0
  %v1341 = vsel %vm1025, %v899, 0
  %1343 = vmatpush.msra.mxu0 0.0
  %1344 = vmatpush.msra.mxu0 0.0
  %1345 = vmatpush.msra.mxu0 0.0
  %1346 = vmatpush.msra.mxu0 0.0
  %1347 = vmatpush.msra.mxu0 0.0
  %1348 = vmatpush.msra.mxu0 0.0
  %1349 = vmatpush.msra.mxu0 0.0
  %1350 = vmatpush.msra.mxu0 0.0
  %1351 = vmatpush.msra.mxu0 %v1309
  %1352 = vmatpush.msra.mxu0 %v1306
  %1353 = vmatpush.msra.mxu0 %v1303
  %1354 = vmatpush.msra.mxu0 %v1300
  %1355 = vmatpush.msra.mxu0 %v1297
  %1356 = vmatpush.msra.mxu0 %v1294
  %1357 = vmatpush.msra.mxu0 %v1291
  %1358 = vmatpush.msra.mxu0 %v1288
  %1359 = vmatmul.f32.gmra.mxu0 %v1320
  %v1360 = vpop.f32.mrf.mxu0
  %v1361 = vadd.f32 0.0, %v1360
  %1362 = vmatmul.f32.gmra.mxu0 %v1323
  %v1363 = vpop.f32.mrf.mxu0
  %v1364 = vadd.f32 0.0, %v1363
  %1365 = vmatmul.f32.gmra.mxu0 %v1326
  %v1366 = vpop.f32.mrf.mxu0
  %v1367 = vadd.f32 0.0, %v1366
  %1368 = vmatmul.f32.gmra.mxu0 %v1329
  %v1369 = vpop.f32.mrf.mxu0
  %v1370 = vadd.f32 0.0, %v1369
  %1371 = vmatmul.f32.gmra.mxu0 %v1332
  %v1372 = vpop.f32.mrf.mxu0
  %v1373 = vadd.f32 0.0, %v1372
  %1374 = vmatmul.f32.gmra.mxu0 %v1335
  %v1375 = vpop.f32.mrf.mxu0
  %v1376 = vadd.f32 0.0, %v1375
  %1377 = vmatmul.f32.gmra.mxu0 %v1338
  %v1378 = vpop.f32.mrf.mxu0
  %v1379 = vadd.f32 0.0, %v1378
  %1380 = vmatmul.f32.gmra.mxu0 %v1341
  %v1381 = vpop.f32.mrf.mxu0
  %v1382 = vadd.f32 0.0, %v1381
  %1383 = vdwg.mxu0
  %v1384 = vld [vmem:[%s18] sm:$0xff]
  %v1385 = vld [vmem:[%s18 + $0x8] sm:$0xff]
  %v1386 = vld [vmem:[%s18 + $0x10] sm:$0xff]
  %v1387 = vld [vmem:[%s18 + $0x18] sm:$0xff]
  %v1388 = vld [vmem:[%s18 + $0x20] sm:$0xff]
  %v1389 = vld [vmem:[%s18 + $0x28] sm:$0xff]
  %v1390 = vld [vmem:[%s18 + $0x30] sm:$0xff]
  %v1391 = vld [vmem:[%s18 + $0x38] sm:$0xff]
  %v1392 = vld [vmem:[%s18 + $0x40] sm:$0xff]
  %v1393 = vld [vmem:[%s18 + $0x48] sm:$0xff]
  %v1394 = vld [vmem:[%s18 + $0x50] sm:$0xff]
  %v1395 = vld [vmem:[%s18 + $0x58] sm:$0xff]
  %v1396 = vld [vmem:[%s18 + $0x60] sm:$0xff]
  %v1397 = vld [vmem:[%s18 + $0x68] sm:$0xff]
  %v1398 = vld [vmem:[%s18 + $0x70] sm:$0xff]
  %v1399 = vld [vmem:[%s18 + $0x78] sm:$0xff]
  %v1400 = vld [vmem:[%s19] sm:$0x1]
  %v1402 = vperm.slane %v1400, 0
  %1404 = vmatpush.msra.mxu0 %v1399
  %1405 = vmatpush.msra.mxu0 %v1398
  %1406 = vmatpush.msra.mxu0 %v1397
  %1407 = vmatpush.msra.mxu0 %v1396
  %1408 = vmatpush.msra.mxu0 %v1395
  %1409 = vmatpush.msra.mxu0 %v1394
  %1410 = vmatpush.msra.mxu0 %v1393
  %1411 = vmatpush.msra.mxu0 %v1392
  %1412 = vmatpush.msra.mxu0 %v1391
  %1413 = vmatpush.msra.mxu0 %v1390
  %1414 = vmatpush.msra.mxu0 %v1389
  %1415 = vmatpush.msra.mxu0 %v1388
  %1416 = vmatpush.msra.mxu0 %v1387
  %1417 = vmatpush.msra.mxu0 %v1386
  %1418 = vmatpush.msra.mxu0 %v1385
  %1419 = vmatpush.msra.mxu0 %v1384
  %1420 = vmatmul.f32.gmra.mxu0 %v1361
  %v1421 = vpop.f32.mrf.mxu0
  %v1422 = vadd.f32 %v1402, %v1421
  %1423 = vmatmul.f32.gmra.mxu0 %v1364
  %v1424 = vpop.f32.mrf.mxu0
  %v1425 = vadd.f32 %v1402, %v1424
  %1426 = vmatmul.f32.gmra.mxu0 %v1367
  %v1427 = vpop.f32.mrf.mxu0
  %v1428 = vadd.f32 %v1402, %v1427
  %1429 = vmatmul.f32.gmra.mxu0 %v1370
  %v1430 = vpop.f32.mrf.mxu0
  %v1431 = vadd.f32 %v1402, %v1430
  %1432 = vmatmul.f32.gmra.mxu0 %v1373
  %v1433 = vpop.f32.mrf.mxu0
  %v1434 = vadd.f32 %v1402, %v1433
  %1435 = vmatmul.f32.gmra.mxu0 %v1376
  %v1436 = vpop.f32.mrf.mxu0
  %v1437 = vadd.f32 %v1402, %v1436
  %1438 = vmatmul.f32.gmra.mxu0 %v1379
  %v1439 = vpop.f32.mrf.mxu0
  %v1440 = vadd.f32 %v1402, %v1439
  %1441 = vmatmul.f32.gmra.mxu0 %v1382
  %v1442 = vpop.f32.mrf.mxu0
  %v1443 = vadd.f32 %v1402, %v1442
  %1444 = vdwg.mxu0
  %v1445 = vmax.f32 %v1422, 0.0
  %v1446 = vmax.f32 %v1425, 0.0
  %v1447 = vmax.f32 %v1428, 0.0
  %v1448 = vmax.f32 %v1431, 0.0
  %v1449 = vmax.f32 %v1434, 0.0
  %v1450 = vmax.f32 %v1437, 0.0
  %v1451 = vmax.f32 %v1440, 0.0
  %v1452 = vmax.f32 %v1443, 0.0
  %1453 = vmatpush.msra.mxu0 0.0
  %1454 = vmatpush.msra.mxu0 0.0
  %1455 = vmatpush.msra.mxu0 0.0
  %1456 = vmatpush.msra.mxu0 0.0
  %1457 = vmatpush.msra.mxu0 0.0
  %1458 = vmatpush.msra.mxu0 0.0
  %1459 = vmatpush.msra.mxu0 0.0
  %1460 = vmatpush.msra.mxu0 0.0
  %1461 = vmatpush.msra.mxu0 %v1452
  %1462 = vmatpush.msra.mxu0 %v1451
  %1463 = vmatpush.msra.mxu0 %v1450
  %1464 = vmatpush.msra.mxu0 %v1449
  %1465 = vmatpush.msra.mxu0 %v1448
  %1466 = vmatpush.msra.mxu0 %v1447
  %1467 = vmatpush.msra.mxu0 %v1446
  %1468 = vmatpush.msra.mxu0 %v1445
  %1469 = vmatmul.f32.gmra.mxu0 %v1320
  %v1470 = vpop.f32.mrf.mxu0
  %v1471 = vadd.f32 0.0, %v1470
  %1472 = vmatmul.f32.gmra.mxu0 %v1323
  %v1473 = vpop.f32.mrf.mxu0
  %v1474 = vadd.f32 0.0, %v1473
  %1475 = vmatmul.f32.gmra.mxu0 %v1326
  %v1476 = vpop.f32.mrf.mxu0
  %v1477 = vadd.f32 0.0, %v1476
  %1478 = vmatmul.f32.gmra.mxu0 %v1329
  %v1479 = vpop.f32.mrf.mxu0
  %v1480 = vadd.f32 0.0, %v1479
  %1481 = vmatmul.f32.gmra.mxu0 %v1332
  %v1482 = vpop.f32.mrf.mxu0
  %v1483 = vadd.f32 0.0, %v1482
  %1484 = vmatmul.f32.gmra.mxu0 %v1335
  %v1485 = vpop.f32.mrf.mxu0
  %v1486 = vadd.f32 0.0, %v1485
  %1487 = vmatmul.f32.gmra.mxu0 %v1338
  %v1488 = vpop.f32.mrf.mxu0
  %v1489 = vadd.f32 0.0, %v1488
  %1490 = vmatmul.f32.gmra.mxu0 %v1341
  %v1491 = vpop.f32.mrf.mxu0
  %v1492 = vadd.f32 0.0, %v1491
  %1493 = vdwg.mxu0
  %v1494 = vld [vmem:[%s20] sm:$0xff]
  %v1495 = vld [vmem:[%s20 + $0x8] sm:$0xff]
  %v1496 = vld [vmem:[%s20 + $0x10] sm:$0xff]
  %v1497 = vld [vmem:[%s20 + $0x18] sm:$0xff]
  %v1498 = vld [vmem:[%s20 + $0x20] sm:$0xff]
  %v1499 = vld [vmem:[%s20 + $0x28] sm:$0xff]
  %v1500 = vld [vmem:[%s20 + $0x30] sm:$0xff]
  %v1501 = vld [vmem:[%s20 + $0x38] sm:$0xff]
  %v1502 = vld [vmem:[%s20 + $0x40] sm:$0xff]
  %v1503 = vld [vmem:[%s20 + $0x48] sm:$0xff]
  %v1504 = vld [vmem:[%s20 + $0x50] sm:$0xff]
  %v1505 = vld [vmem:[%s20 + $0x58] sm:$0xff]
  %v1506 = vld [vmem:[%s20 + $0x60] sm:$0xff]
  %v1507 = vld [vmem:[%s20 + $0x68] sm:$0xff]
  %v1508 = vld [vmem:[%s20 + $0x70] sm:$0xff]
  %v1509 = vld [vmem:[%s20 + $0x78] sm:$0xff]
  %v1510 = vld [vmem:[%s21] sm:$0x1]
  %v1512 = vperm.slane %v1510, 0
  %1514 = vmatpush.msra.mxu0 %v1509
  %1515 = vmatpush.msra.mxu0 %v1508
  %1516 = vmatpush.msra.mxu0 %v1507
  %1517 = vmatpush.msra.mxu0 %v1506
  %1518 = vmatpush.msra.mxu0 %v1505
  %1519 = vmatpush.msra.mxu0 %v1504
  %1520 = vmatpush.msra.mxu0 %v1503
  %1521 = vmatpush.msra.mxu0 %v1502
  %1522 = vmatpush.msra.mxu0 %v1501
  %1523 = vmatpush.msra.mxu0 %v1500
  %1524 = vmatpush.msra.mxu0 %v1499
  %1525 = vmatpush.msra.mxu0 %v1498
  %1526 = vmatpush.msra.mxu0 %v1497
  %1527 = vmatpush.msra.mxu0 %v1496
  %1528 = vmatpush.msra.mxu0 %v1495
  %1529 = vmatpush.msra.mxu0 %v1494
  %1530 = vmatmul.f32.gmra.mxu0 %v1471
  %v1531 = vpop.f32.mrf.mxu0
  %v1532 = vadd.f32 %v1512, %v1531
  %1533 = vmatmul.f32.gmra.mxu0 %v1474
  %v1534 = vpop.f32.mrf.mxu0
  %v1535 = vadd.f32 %v1512, %v1534
  %1536 = vmatmul.f32.gmra.mxu0 %v1477
  %v1537 = vpop.f32.mrf.mxu0
  %v1538 = vadd.f32 %v1512, %v1537
  %1539 = vmatmul.f32.gmra.mxu0 %v1480
  %v1540 = vpop.f32.mrf.mxu0
  %v1541 = vadd.f32 %v1512, %v1540
  %1542 = vmatmul.f32.gmra.mxu0 %v1483
  %v1543 = vpop.f32.mrf.mxu0
  %v1544 = vadd.f32 %v1512, %v1543
  %1545 = vmatmul.f32.gmra.mxu0 %v1486
  %v1546 = vpop.f32.mrf.mxu0
  %v1547 = vadd.f32 %v1512, %v1546
  %1548 = vmatmul.f32.gmra.mxu0 %v1489
  %v1549 = vpop.f32.mrf.mxu0
  %v1550 = vadd.f32 %v1512, %v1549
  %1551 = vmatmul.f32.gmra.mxu0 %v1492
  %v1552 = vpop.f32.mrf.mxu0
  %v1553 = vadd.f32 %v1512, %v1552
  %1554 = vdwg.mxu0
  %v1555 = vmax.f32 %v1532, 0.0
  %v1556 = vmax.f32 %v1535, 0.0
  %v1557 = vmax.f32 %v1538, 0.0
  %v1558 = vmax.f32 %v1541, 0.0
  %v1559 = vmax.f32 %v1544, 0.0
  %v1560 = vmax.f32 %v1547, 0.0
  %v1561 = vmax.f32 %v1550, 0.0
  %v1562 = vmax.f32 %v1553, 0.0
  %1563 = vmatpush.msra.mxu0 0.0
  %1564 = vmatpush.msra.mxu0 0.0
  %1565 = vmatpush.msra.mxu0 0.0
  %1566 = vmatpush.msra.mxu0 0.0
  %1567 = vmatpush.msra.mxu0 0.0
  %1568 = vmatpush.msra.mxu0 0.0
  %1569 = vmatpush.msra.mxu0 0.0
  %1570 = vmatpush.msra.mxu0 0.0
  %1571 = vmatpush.msra.mxu0 %v1562
  %1572 = vmatpush.msra.mxu0 %v1561
  %1573 = vmatpush.msra.mxu0 %v1560
  %1574 = vmatpush.msra.mxu0 %v1559
  %1575 = vmatpush.msra.mxu0 %v1558
  %1576 = vmatpush.msra.mxu0 %v1557
  %1577 = vmatpush.msra.mxu0 %v1556
  %1578 = vmatpush.msra.mxu0 %v1555
  %1579 = vmatmul.f32.gmra.mxu0 %v1320
  %v1580 = vpop.f32.mrf.mxu0
  %v1581 = vadd.f32 0.0, %v1580
  %1582 = vmatmul.f32.gmra.mxu0 %v1323
  %v1583 = vpop.f32.mrf.mxu0
  %v1584 = vadd.f32 0.0, %v1583
  %1585 = vmatmul.f32.gmra.mxu0 %v1326
  %v1586 = vpop.f32.mrf.mxu0
  %v1587 = vadd.f32 0.0, %v1586
  %1588 = vmatmul.f32.gmra.mxu0 %v1329
  %v1589 = vpop.f32.mrf.mxu0
  %v1590 = vadd.f32 0.0, %v1589
  %1591 = vmatmul.f32.gmra.mxu0 %v1332
  %v1592 = vpop.f32.mrf.mxu0
  %v1593 = vadd.f32 0.0, %v1592
  %1594 = vmatmul.f32.gmra.mxu0 %v1335
  %v1595 = vpop.f32.mrf.mxu0
  %v1596 = vadd.f32 0.0, %v1595
  %1597 = vmatmul.f32.gmra.mxu0 %v1338
  %v1598 = vpop.f32.mrf.mxu0
  %v1599 = vadd.f32 0.0, %v1598
  %1600 = vmatmul.f32.gmra.mxu0 %v1341
  %v1601 = vpop.f32.mrf.mxu0
  %v1602 = vadd.f32 0.0, %v1601
  %1603 = vdwg.mxu0
  %v1604 = vld [vmem:[%s22] sm:$0xff]
  %v1605 = vld [vmem:[%s22 + $0x8] sm:$0xff]
  %v1606 = vld [vmem:[%s22 + $0x10] sm:$0xff]
  %v1607 = vld [vmem:[%s22 + $0x18] sm:$0xff]
  %v1608 = vld [vmem:[%s22 + $0x20] sm:$0xff]
  %v1609 = vld [vmem:[%s22 + $0x28] sm:$0xff]
  %v1610 = vld [vmem:[%s22 + $0x30] sm:$0xff]
  %v1611 = vld [vmem:[%s22 + $0x38] sm:$0xff]
  %v1612 = vld [vmem:[%s22 + $0x40] sm:$0xff]
  %v1613 = vld [vmem:[%s22 + $0x48] sm:$0xff]
  %v1614 = vld [vmem:[%s22 + $0x50] sm:$0xff]
  %v1615 = vld [vmem:[%s22 + $0x58] sm:$0xff]
  %v1616 = vld [vmem:[%s22 + $0x60] sm:$0xff]
  %v1617 = vld [vmem:[%s22 + $0x68] sm:$0xff]
  %v1618 = vld [vmem:[%s22 + $0x70] sm:$0xff]
  %v1619 = vld [vmem:[%s22 + $0x78] sm:$0xff]
  %v1620 = vld [vmem:[%s23] sm:$0x1]
  %v1622 = vperm.slane %v1620, 0
  %1624 = vmatpush.msra.mxu0 %v1619
  %1625 = vmatpush.msra.mxu0 %v1618
  %1626 = vmatpush.msra.mxu0 %v1617
  %1627 = vmatpush.msra.mxu0 %v1616
  %1628 = vmatpush.msra.mxu0 %v1615
  %1629 = vmatpush.msra.mxu0 %v1614
  %1630 = vmatpush.msra.mxu0 %v1613
  %1631 = vmatpush.msra.mxu0 %v1612
  %1632 = vmatpush.msra.mxu0 %v1611
  %1633 = vmatpush.msra.mxu0 %v1610
  %1634 = vmatpush.msra.mxu0 %v1609
  %1635 = vmatpush.msra.mxu0 %v1608
  %1636 = vmatpush.msra.mxu0 %v1607
  %1637 = vmatpush.msra.mxu0 %v1606
  %1638 = vmatpush.msra.mxu0 %v1605
  %1639 = vmatpush.msra.mxu0 %v1604
  %1640 = vmatmul.f32.gmra.mxu0 %v1581
  %v1641 = vpop.f32.mrf.mxu0
  %v1642 = vadd.f32 %v1622, %v1641
  %1643 = vmatmul.f32.gmra.mxu0 %v1584
  %v1644 = vpop.f32.mrf.mxu0
  %v1645 = vadd.f32 %v1622, %v1644
  %1646 = vmatmul.f32.gmra.mxu0 %v1587
  %v1647 = vpop.f32.mrf.mxu0
  %v1648 = vadd.f32 %v1622, %v1647
  %1649 = vmatmul.f32.gmra.mxu0 %v1590
  %v1650 = vpop.f32.mrf.mxu0
  %v1651 = vadd.f32 %v1622, %v1650
  %1652 = vmatmul.f32.gmra.mxu0 %v1593
  %v1653 = vpop.f32.mrf.mxu0
  %v1654 = vadd.f32 %v1622, %v1653
  %1655 = vmatmul.f32.gmra.mxu0 %v1596
  %v1656 = vpop.f32.mrf.mxu0
  %v1657 = vadd.f32 %v1622, %v1656
  %1658 = vmatmul.f32.gmra.mxu0 %v1599
  %v1659 = vpop.f32.mrf.mxu0
  %v1660 = vadd.f32 %v1622, %v1659
  %1661 = vmatmul.f32.gmra.mxu0 %v1602
  %v1662 = vpop.f32.mrf.mxu0
  %v1663 = vadd.f32 %v1622, %v1662
  %1664 = vdwg.mxu0
  %1665 = vst [vmem:[%s26] sm:$0xff] %v1642
  %1666 = vst [vmem:[%s26 + $0x8] sm:$0xff] %v1645
  %1667 = vst [vmem:[%s26 + $0x10] sm:$0xff] %v1648
  %1668 = vst [vmem:[%s26 + $0x18] sm:$0xff] %v1651
  %1669 = vst [vmem:[%s26 + $0x20] sm:$0xff] %v1654
  %1670 = vst [vmem:[%s26 + $0x28] sm:$0xff] %v1657
  %1671 = vst [vmem:[%s26 + $0x30] sm:$0xff] %v1660
  %1672 = vst [vmem:[%s26 + $0x38] sm:$0xff] %v1663
  %1673 = vset.pattern.permute.xlu0 1
  %1674 = vperm.xlu0 %1673, %v776
  %v1675 = vpop.permute.xlu0 %1674
  %1677 = vset.pattern.permute.xlu0 1
  %1678 = vperm.xlu0 %1677, %v779
  %v1679 = vpop.permute.xlu0 %1678
  %1681 = vset.pattern.permute.xlu0 1
  %1682 = vperm.xlu0 %1681, %v782
  %v1683 = vpop.permute.xlu0 %1682
  %1685 = vset.pattern.permute.xlu0 1
  %1686 = vperm.xlu0 %1685, %v785
  %v1687 = vpop.permute.xlu0 %1686
  %1689 = vset.pattern.permute.xlu0 1
  %1690 = vperm.xlu0 %1689, %v788
  %v1691 = vpop.permute.xlu0 %1690
  %1693 = vset.pattern.permute.xlu0 1
  %1694 = vperm.xlu0 %1693, %v791
  %v1695 = vpop.permute.xlu0 %1694
  %1697 = vset.pattern.permute.xlu0 1
  %1698 = vperm.xlu0 %1697, %v794
  %v1699 = vpop.permute.xlu0 %1698
  %1701 = vset.pattern.permute.xlu0 1
  %1702 = vperm.xlu0 %1701, %v797
  %v1703 = vpop.permute.xlu0 %1702
  %v1705 = vmul.f32 %v1675, %v943
  %v1706 = vmul.f32 %v1679, %v943
  %v1707 = vmul.f32 %v1683, %v943
  %v1708 = vmul.f32 %v1687, %v943
  %v1709 = vmul.f32 %v1691, %v943
  %v1710 = vmul.f32 %v1695, %v943
  %v1711 = vmul.f32 %v1699, %v943
  %v1712 = vmul.f32 %v1703, %v943
  %1713 = vset.pattern.permute.xlu0 1
  %1714 = vperm.xlu0 %1713, %v825
  %v1715 = vpop.permute.xlu0 %1714
  %1717 = vset.pattern.permute.xlu0 1
  %1718 = vperm.xlu0 %1717, %v828
  %v1719 = vpop.permute.xlu0 %1718
  %1721 = vset.pattern.permute.xlu0 1
  %1722 = vperm.xlu0 %1721, %v831
  %v1723 = vpop.permute.xlu0 %1722
  %1725 = vset.pattern.permute.xlu0 1
  %1726 = vperm.xlu0 %1725, %v834
  %v1727 = vpop.permute.xlu0 %1726
  %1729 = vset.pattern.permute.xlu0 1
  %1730 = vperm.xlu0 %1729, %v837
  %v1731 = vpop.permute.xlu0 %1730
  %1733 = vset.pattern.permute.xlu0 1
  %1734 = vperm.xlu0 %1733, %v840
  %v1735 = vpop.permute.xlu0 %1734
  %1737 = vset.pattern.permute.xlu0 1
  %1738 = vperm.xlu0 %1737, %v843
  %v1739 = vpop.permute.xlu0 %1738
  %1741 = vset.pattern.permute.xlu0 1
  %1742 = vperm.xlu0 %1741, %v846
  %v1743 = vpop.permute.xlu0 %1742
  %v1745 = vmul.f32 %v1715, %v994
  %v1746 = vmul.f32 %v1719, %v994
  %v1747 = vmul.f32 %v1723, %v994
  %v1748 = vmul.f32 %v1727, %v994
  %v1749 = vmul.f32 %v1731, %v994
  %v1750 = vmul.f32 %v1735, %v994
  %v1751 = vmul.f32 %v1739, %v994
  %v1752 = vmul.f32 %v1743, %v994
  %v1753 = vadd.f32 %v1705, %v1745
  %v1754 = vadd.f32 %v1706, %v1746
  %v1755 = vadd.f32 %v1707, %v1747
  %v1756 = vadd.f32 %v1708, %v1748
  %v1757 = vadd.f32 %v1709, %v1749
  %v1758 = vadd.f32 %v1710, %v1750
  %v1759 = vadd.f32 %v1711, %v1751
  %v1760 = vadd.f32 %v1712, %v1752
  %v1761 = vperm.slane %v882, 1
  %v1762 = vadd.f32 %v1753, %v1761
  %v1763 = vadd.f32 %v1754, %v1761
  %v1764 = vadd.f32 %v1755, %v1761
  %v1765 = vadd.f32 %v1756, %v1761
  %v1766 = vadd.f32 %v1757, %v1761
  %v1767 = vadd.f32 %v1758, %v1761
  %v1768 = vadd.f32 %v1759, %v1761
  %v1769 = vadd.f32 %v1760, %v1761
  %v1770 = vld [vmem:[%s11] sm:$0x1]
  %v1772 = vperm.slane %v1770, 0
  %1774 = vmatpush.msra.mxu0 0.0
  %1775 = vmatpush.msra.mxu0 0.0
  %1776 = vmatpush.msra.mxu0 0.0
  %1777 = vmatpush.msra.mxu0 0.0
  %1778 = vmatpush.msra.mxu0 0.0
  %1779 = vmatpush.msra.mxu0 0.0
  %1780 = vmatpush.msra.mxu0 0.0
  %1781 = vmatpush.msra.mxu0 0.0
  %1782 = vmatpush.msra.mxu0 %v1769
  %1783 = vmatpush.msra.mxu0 %v1768
  %1784 = vmatpush.msra.mxu0 %v1767
  %1785 = vmatpush.msra.mxu0 %v1766
  %1786 = vmatpush.msra.mxu0 %v1765
  %1787 = vmatpush.msra.mxu0 %v1764
  %1788 = vmatpush.msra.mxu0 %v1763
  %1789 = vmatpush.msra.mxu0 %v1762
  %1790 = vmatmul.f32.gmra.mxu0 %v1027
  %v1791 = vpop.f32.mrf.mxu0
  %v1792 = vadd.f32 %v1772, %v1791
  %1793 = vmatmul.f32.gmra.mxu0 %v1030
  %v1794 = vpop.f32.mrf.mxu0
  %v1795 = vadd.f32 %v1772, %v1794
  %1796 = vmatmul.f32.gmra.mxu0 %v1033
  %v1797 = vpop.f32.mrf.mxu0
  %v1798 = vadd.f32 %v1772, %v1797
  %1799 = vmatmul.f32.gmra.mxu0 %v1036
  %v1800 = vpop.f32.mrf.mxu0
  %v1801 = vadd.f32 %v1772, %v1800
  %1802 = vmatmul.f32.gmra.mxu0 %v1039
  %v1803 = vpop.f32.mrf.mxu0
  %v1804 = vadd.f32 %v1772, %v1803
  %1805 = vmatmul.f32.gmra.mxu0 %v1042
  %v1806 = vpop.f32.mrf.mxu0
  %v1807 = vadd.f32 %v1772, %v1806
  %1808 = vmatmul.f32.gmra.mxu0 %v1045
  %v1809 = vpop.f32.mrf.mxu0
  %v1810 = vadd.f32 %v1772, %v1809
  %1811 = vmatmul.f32.gmra.mxu0 %v1048
  %v1812 = vpop.f32.mrf.mxu0
  %v1813 = vadd.f32 %v1772, %v1812
  %1814 = vdwg.mxu0
  %v1815 = vmax.f32 %v1792, 0.0
  %v1816 = vmax.f32 %v1795, 0.0
  %v1817 = vmax.f32 %v1798, 0.0
  %v1818 = vmax.f32 %v1801, 0.0
  %v1819 = vmax.f32 %v1804, 0.0
  %v1820 = vmax.f32 %v1807, 0.0
  %v1821 = vmax.f32 %v1810, 0.0
  %v1822 = vmax.f32 %v1813, 0.0
  %1823 = vmatpush.msra.mxu0 0.0
  %1824 = vmatpush.msra.mxu0 0.0
  %1825 = vmatpush.msra.mxu0 0.0
  %1826 = vmatpush.msra.mxu0 0.0
  %1827 = vmatpush.msra.mxu0 0.0
  %1828 = vmatpush.msra.mxu0 0.0
  %1829 = vmatpush.msra.mxu0 0.0
  %1830 = vmatpush.msra.mxu0 0.0
  %1831 = vmatpush.msra.mxu0 %v1822
  %1832 = vmatpush.msra.mxu0 %v1821
  %1833 = vmatpush.msra.mxu0 %v1820
  %1834 = vmatpush.msra.mxu0 %v1819
  %1835 = vmatpush.msra.mxu0 %v1818
  %1836 = vmatpush.msra.mxu0 %v1817
  %1837 = vmatpush.msra.mxu0 %v1816
  %1838 = vmatpush.msra.mxu0 %v1815
  %1839 = vmatmul.f32.gmra.mxu0 %v1027
  %v1840 = vpop.f32.mrf.mxu0
  %v1841 = vadd.f32 0.0, %v1840
  %1842 = vmatmul.f32.gmra.mxu0 %v1030
  %v1843 = vpop.f32.mrf.mxu0
  %v1844 = vadd.f32 0.0, %v1843
  %1845 = vmatmul.f32.gmra.mxu0 %v1033
  %v1846 = vpop.f32.mrf.mxu0
  %v1847 = vadd.f32 0.0, %v1846
  %1848 = vmatmul.f32.gmra.mxu0 %v1036
  %v1849 = vpop.f32.mrf.mxu0
  %v1850 = vadd.f32 0.0, %v1849
  %1851 = vmatmul.f32.gmra.mxu0 %v1039
  %v1852 = vpop.f32.mrf.mxu0
  %v1853 = vadd.f32 0.0, %v1852
  %1854 = vmatmul.f32.gmra.mxu0 %v1042
  %v1855 = vpop.f32.mrf.mxu0
  %v1856 = vadd.f32 0.0, %v1855
  %1857 = vmatmul.f32.gmra.mxu0 %v1045
  %v1858 = vpop.f32.mrf.mxu0
  %v1859 = vadd.f32 0.0, %v1858
  %1860 = vmatmul.f32.gmra.mxu0 %v1048
  %v1861 = vpop.f32.mrf.mxu0
  %v1862 = vadd.f32 0.0, %v1861
  %1863 = vdwg.mxu0
  %v1864 = vld [vmem:[%s13] sm:$0xff]
  %v1865 = vld [vmem:[%s13 + $0x8] sm:$0xff]
  %v1866 = vld [vmem:[%s13 + $0x10] sm:$0xff]
  %v1867 = vld [vmem:[%s13 + $0x18] sm:$0xff]
  %v1868 = vld [vmem:[%s13 + $0x20] sm:$0xff]
  %v1869 = vld [vmem:[%s13 + $0x28] sm:$0xff]
  %v1870 = vld [vmem:[%s13 + $0x30] sm:$0xff]
  %v1871 = vld [vmem:[%s13 + $0x38] sm:$0xff]
  %v1872 = vld [vmem:[%s13 + $0x40] sm:$0xff]
  %v1873 = vld [vmem:[%s13 + $0x48] sm:$0xff]
  %v1874 = vld [vmem:[%s13 + $0x50] sm:$0xff]
  %v1875 = vld [vmem:[%s13 + $0x58] sm:$0xff]
  %v1876 = vld [vmem:[%s13 + $0x60] sm:$0xff]
  %v1877 = vld [vmem:[%s13 + $0x68] sm:$0xff]
  %v1878 = vld [vmem:[%s13 + $0x70] sm:$0xff]
  %v1879 = vld [vmem:[%s13 + $0x78] sm:$0xff]
  %v1880 = vld [vmem:[%s14] sm:$0x1]
  %v1882 = vperm.slane %v1880, 0
  %1884 = vmatpush.msra.mxu0 %v1879
  %1885 = vmatpush.msra.mxu0 %v1878
  %1886 = vmatpush.msra.mxu0 %v1877
  %1887 = vmatpush.msra.mxu0 %v1876
  %1888 = vmatpush.msra.mxu0 %v1875
  %1889 = vmatpush.msra.mxu0 %v1874
  %1890 = vmatpush.msra.mxu0 %v1873
  %1891 = vmatpush.msra.mxu0 %v1872
  %1892 = vmatpush.msra.mxu0 %v1871
  %1893 = vmatpush.msra.mxu0 %v1870
  %1894 = vmatpush.msra.mxu0 %v1869
  %1895 = vmatpush.msra.mxu0 %v1868
  %1896 = vmatpush.msra.mxu0 %v1867
  %1897 = vmatpush.msra.mxu0 %v1866
  %1898 = vmatpush.msra.mxu0 %v1865
  %1899 = vmatpush.msra.mxu0 %v1864
  %1900 = vmatmul.f32.gmra.mxu0 %v1841
  %v1901 = vpop.f32.mrf.mxu0
  %v1902 = vadd.f32 %v1882, %v1901
  %1903 = vmatmul.f32.gmra.mxu0 %v1844
  %v1904 = vpop.f32.mrf.mxu0
  %v1905 = vadd.f32 %v1882, %v1904
  %1906 = vmatmul.f32.gmra.mxu0 %v1847
  %v1907 = vpop.f32.mrf.mxu0
  %v1908 = vadd.f32 %v1882, %v1907
  %1909 = vmatmul.f32.gmra.mxu0 %v1850
  %v1910 = vpop.f32.mrf.mxu0
  %v1911 = vadd.f32 %v1882, %v1910
  %1912 = vmatmul.f32.gmra.mxu0 %v1853
  %v1913 = vpop.f32.mrf.mxu0
  %v1914 = vadd.f32 %v1882, %v1913
  %1915 = vmatmul.f32.gmra.mxu0 %v1856
  %v1916 = vpop.f32.mrf.mxu0
  %v1917 = vadd.f32 %v1882, %v1916
  %1918 = vmatmul.f32.gmra.mxu0 %v1859
  %v1919 = vpop.f32.mrf.mxu0
  %v1920 = vadd.f32 %v1882, %v1919
  %1921 = vmatmul.f32.gmra.mxu0 %v1862
  %v1922 = vpop.f32.mrf.mxu0
  %v1923 = vadd.f32 %v1882, %v1922
  %1924 = vdwg.mxu0
  %v1925 = vmax.f32 %v1902, 0.0
  %v1926 = vmax.f32 %v1905, 0.0
  %v1927 = vmax.f32 %v1908, 0.0
  %v1928 = vmax.f32 %v1911, 0.0
  %v1929 = vmax.f32 %v1914, 0.0
  %v1930 = vmax.f32 %v1917, 0.0
  %v1931 = vmax.f32 %v1920, 0.0
  %v1932 = vmax.f32 %v1923, 0.0
  %1933 = vmatpush.msra.mxu0 0.0
  %1934 = vmatpush.msra.mxu0 0.0
  %1935 = vmatpush.msra.mxu0 0.0
  %1936 = vmatpush.msra.mxu0 0.0
  %1937 = vmatpush.msra.mxu0 0.0
  %1938 = vmatpush.msra.mxu0 0.0
  %1939 = vmatpush.msra.mxu0 0.0
  %1940 = vmatpush.msra.mxu0 0.0
  %1941 = vmatpush.msra.mxu0 %v1932
  %1942 = vmatpush.msra.mxu0 %v1931
  %1943 = vmatpush.msra.mxu0 %v1930
  %1944 = vmatpush.msra.mxu0 %v1929
  %1945 = vmatpush.msra.mxu0 %v1928
  %1946 = vmatpush.msra.mxu0 %v1927
  %1947 = vmatpush.msra.mxu0 %v1926
  %1948 = vmatpush.msra.mxu0 %v1925
  %1949 = vmatmul.f32.gmra.mxu0 %v1027
  %v1950 = vpop.f32.mrf.mxu0
  %v1951 = vadd.f32 0.0, %v1950
  %1952 = vmatmul.f32.gmra.mxu0 %v1030
  %v1953 = vpop.f32.mrf.mxu0
  %v1954 = vadd.f32 0.0, %v1953
  %1955 = vmatmul.f32.gmra.mxu0 %v1033
  %v1956 = vpop.f32.mrf.mxu0
  %v1957 = vadd.f32 0.0, %v1956
  %1958 = vmatmul.f32.gmra.mxu0 %v1036
  %v1959 = vpop.f32.mrf.mxu0
  %v1960 = vadd.f32 0.0, %v1959
  %1961 = vmatmul.f32.gmra.mxu0 %v1039
  %v1962 = vpop.f32.mrf.mxu0
  %v1963 = vadd.f32 0.0, %v1962
  %1964 = vmatmul.f32.gmra.mxu0 %v1042
  %v1965 = vpop.f32.mrf.mxu0
  %v1966 = vadd.f32 0.0, %v1965
  %1967 = vmatmul.f32.gmra.mxu0 %v1045
  %v1968 = vpop.f32.mrf.mxu0
  %v1969 = vadd.f32 0.0, %v1968
  %1970 = vmatmul.f32.gmra.mxu0 %v1048
  %v1971 = vpop.f32.mrf.mxu0
  %v1972 = vadd.f32 0.0, %v1971
  %1973 = vdwg.mxu0
  %v1974 = vld [vmem:[%s15] sm:$0xff]
  %v1975 = vld [vmem:[%s15 + $0x8] sm:$0xff]
  %v1976 = vld [vmem:[%s15 + $0x10] sm:$0xff]
  %v1977 = vld [vmem:[%s15 + $0x18] sm:$0xff]
  %v1978 = vld [vmem:[%s15 + $0x20] sm:$0xff]
  %v1979 = vld [vmem:[%s15 + $0x28] sm:$0xff]
  %v1980 = vld [vmem:[%s15 + $0x30] sm:$0xff]
  %v1981 = vld [vmem:[%s15 + $0x38] sm:$0xff]
  %v1982 = vld [vmem:[%s15 + $0x40] sm:$0xff]
  %v1983 = vld [vmem:[%s15 + $0x48] sm:$0xff]
  %v1984 = vld [vmem:[%s15 + $0x50] sm:$0xff]
  %v1985 = vld [vmem:[%s15 + $0x58] sm:$0xff]
  %v1986 = vld [vmem:[%s15 + $0x60] sm:$0xff]
  %v1987 = vld [vmem:[%s15 + $0x68] sm:$0xff]
  %v1988 = vld [vmem:[%s15 + $0x70] sm:$0xff]
  %v1989 = vld [vmem:[%s15 + $0x78] sm:$0xff]
  %v1990 = vld [vmem:[%s16] sm:$0x1]
  %v1992 = vperm.slane %v1990, 0
  %1994 = vmatpush.msra.mxu0 %v1989
  %1995 = vmatpush.msra.mxu0 %v1988
  %1996 = vmatpush.msra.mxu0 %v1987
  %1997 = vmatpush.msra.mxu0 %v1986
  %1998 = vmatpush.msra.mxu0 %v1985
  %1999 = vmatpush.msra.mxu0 %v1984
  %2000 = vmatpush.msra.mxu0 %v1983
  %2001 = vmatpush.msra.mxu0 %v1982
  %2002 = vmatpush.msra.mxu0 %v1981
  %2003 = vmatpush.msra.mxu0 %v1980
  %2004 = vmatpush.msra.mxu0 %v1979
  %2005 = vmatpush.msra.mxu0 %v1978
  %2006 = vmatpush.msra.mxu0 %v1977
  %2007 = vmatpush.msra.mxu0 %v1976
  %2008 = vmatpush.msra.mxu0 %v1975
  %2009 = vmatpush.msra.mxu0 %v1974
  %2010 = vmatmul.f32.gmra.mxu0 %v1951
  %v2011 = vpop.f32.mrf.mxu0
  %v2012 = vadd.f32 %v1992, %v2011
  %2013 = vmatmul.f32.gmra.mxu0 %v1954
  %v2014 = vpop.f32.mrf.mxu0
  %v2015 = vadd.f32 %v1992, %v2014
  %2016 = vmatmul.f32.gmra.mxu0 %v1957
  %v2017 = vpop.f32.mrf.mxu0
  %v2018 = vadd.f32 %v1992, %v2017
  %2019 = vmatmul.f32.gmra.mxu0 %v1960
  %v2020 = vpop.f32.mrf.mxu0
  %v2021 = vadd.f32 %v1992, %v2020
  %2022 = vmatmul.f32.gmra.mxu0 %v1963
  %v2023 = vpop.f32.mrf.mxu0
  %v2024 = vadd.f32 %v1992, %v2023
  %2025 = vmatmul.f32.gmra.mxu0 %v1966
  %v2026 = vpop.f32.mrf.mxu0
  %v2027 = vadd.f32 %v1992, %v2026
  %2028 = vmatmul.f32.gmra.mxu0 %v1969
  %v2029 = vpop.f32.mrf.mxu0
  %v2030 = vadd.f32 %v1992, %v2029
  %2031 = vmatmul.f32.gmra.mxu0 %v1972
  %v2032 = vpop.f32.mrf.mxu0
  %v2033 = vadd.f32 %v1992, %v2032
  %2034 = vdwg.mxu0
  %s2035 = scalar_lea.vmem %s25, 64
  %2036 = vst [vmem:[%s2035] sm:$0xff] %v2012
  %2037 = vst [vmem:[%s2035 + $0x8] sm:$0xff] %v2015
  %2038 = vst [vmem:[%s2035 + $0x10] sm:$0xff] %v2018
  %2039 = vst [vmem:[%s2035 + $0x18] sm:$0xff] %v2021
  %2040 = vst [vmem:[%s2035 + $0x20] sm:$0xff] %v2024
  %2041 = vst [vmem:[%s2035 + $0x28] sm:$0xff] %v2027
  %2042 = vst [vmem:[%s2035 + $0x30] sm:$0xff] %v2030
  %2043 = vst [vmem:[%s2035 + $0x38] sm:$0xff] %v2033
  %2044 = vmatpush.msra.mxu0 0.0
  %2045 = vmatpush.msra.mxu0 0.0
  %2046 = vmatpush.msra.mxu0 0.0
  %2047 = vmatpush.msra.mxu0 0.0
  %2048 = vmatpush.msra.mxu0 0.0
  %2049 = vmatpush.msra.mxu0 0.0
  %2050 = vmatpush.msra.mxu0 0.0
  %2051 = vmatpush.msra.mxu0 0.0
  %2052 = vmatpush.msra.mxu0 %v2033
  %2053 = vmatpush.msra.mxu0 %v2030
  %2054 = vmatpush.msra.mxu0 %v2027
  %2055 = vmatpush.msra.mxu0 %v2024
  %2056 = vmatpush.msra.mxu0 %v2021
  %2057 = vmatpush.msra.mxu0 %v2018
  %2058 = vmatpush.msra.mxu0 %v2015
  %2059 = vmatpush.msra.mxu0 %v2012
  %2060 = vmatmul.f32.gmra.mxu0 %v1320
  %v2061 = vpop.f32.mrf.mxu0
  %v2062 = vadd.f32 0.0, %v2061
  %2063 = vmatmul.f32.gmra.mxu0 %v1323
  %v2064 = vpop.f32.mrf.mxu0
  %v2065 = vadd.f32 0.0, %v2064
  %2066 = vmatmul.f32.gmra.mxu0 %v1326
  %v2067 = vpop.f32.mrf.mxu0
  %v2068 = vadd.f32 0.0, %v2067
  %2069 = vmatmul.f32.gmra.mxu0 %v1329
  %v2070 = vpop.f32.mrf.mxu0
  %v2071 = vadd.f32 0.0, %v2070
  %2072 = vmatmul.f32.gmra.mxu0 %v1332
  %v2073 = vpop.f32.mrf.mxu0
  %v2074 = vadd.f32 0.0, %v2073
  %2075 = vmatmul.f32.gmra.mxu0 %v1335
  %v2076 = vpop.f32.mrf.mxu0
  %v2077 = vadd.f32 0.0, %v2076
  %2078 = vmatmul.f32.gmra.mxu0 %v1338
  %v2079 = vpop.f32.mrf.mxu0
  %v2080 = vadd.f32 0.0, %v2079
  %2081 = vmatmul.f32.gmra.mxu0 %v1341
  %v2082 = vpop.f32.mrf.mxu0
  %v2083 = vadd.f32 0.0, %v2082
  %2084 = vdwg.mxu0
  %v2085 = vld [vmem:[%s18] sm:$0xff]
  %v2086 = vld [vmem:[%s18 + $0x8] sm:$0xff]
  %v2087 = vld [vmem:[%s18 + $0x10] sm:$0xff]
  %v2088 = vld [vmem:[%s18 + $0x18] sm:$0xff]
  %v2089 = vld [vmem:[%s18 + $0x20] sm:$0xff]
  %v2090 = vld [vmem:[%s18 + $0x28] sm:$0xff]
  %v2091 = vld [vmem:[%s18 + $0x30] sm:$0xff]
  %v2092 = vld [vmem:[%s18 + $0x38] sm:$0xff]
  %v2093 = vld [vmem:[%s18 + $0x40] sm:$0xff]
  %v2094 = vld [vmem:[%s18 + $0x48] sm:$0xff]
  %v2095 = vld [vmem:[%s18 + $0x50] sm:$0xff]
  %v2096 = vld [vmem:[%s18 + $0x58] sm:$0xff]
  %v2097 = vld [vmem:[%s18 + $0x60] sm:$0xff]
  %v2098 = vld [vmem:[%s18 + $0x68] sm:$0xff]
  %v2099 = vld [vmem:[%s18 + $0x70] sm:$0xff]
  %v2100 = vld [vmem:[%s18 + $0x78] sm:$0xff]
  %v2101 = vld [vmem:[%s19] sm:$0x1]
  %v2103 = vperm.slane %v2101, 0
  %2105 = vmatpush.msra.mxu0 %v2100
  %2106 = vmatpush.msra.mxu0 %v2099
  %2107 = vmatpush.msra.mxu0 %v2098
  %2108 = vmatpush.msra.mxu0 %v2097
  %2109 = vmatpush.msra.mxu0 %v2096
  %2110 = vmatpush.msra.mxu0 %v2095
  %2111 = vmatpush.msra.mxu0 %v2094
  %2112 = vmatpush.msra.mxu0 %v2093
  %2113 = vmatpush.msra.mxu0 %v2092
  %2114 = vmatpush.msra.mxu0 %v2091
  %2115 = vmatpush.msra.mxu0 %v2090
  %2116 = vmatpush.msra.mxu0 %v2089
  %2117 = vmatpush.msra.mxu0 %v2088
  %2118 = vmatpush.msra.mxu0 %v2087
  %2119 = vmatpush.msra.mxu0 %v2086
  %2120 = vmatpush.msra.mxu0 %v2085
  %2121 = vmatmul.f32.gmra.mxu0 %v2062
  %v2122 = vpop.f32.mrf.mxu0
  %v2123 = vadd.f32 %v2103, %v2122
  %2124 = vmatmul.f32.gmra.mxu0 %v2065
  %v2125 = vpop.f32.mrf.mxu0
  %v2126 = vadd.f32 %v2103, %v2125
  %2127 = vmatmul.f32.gmra.mxu0 %v2068
  %v2128 = vpop.f32.mrf.mxu0
  %v2129 = vadd.f32 %v2103, %v2128
  %2130 = vmatmul.f32.gmra.mxu0 %v2071
  %v2131 = vpop.f32.mrf.mxu0
  %v2132 = vadd.f32 %v2103, %v2131
  %2133 = vmatmul.f32.gmra.mxu0 %v2074
  %v2134 = vpop.f32.mrf.mxu0
  %v2135 = vadd.f32 %v2103, %v2134
  %2136 = vmatmul.f32.gmra.mxu0 %v2077
  %v2137 = vpop.f32.mrf.mxu0
  %v2138 = vadd.f32 %v2103, %v2137
  %2139 = vmatmul.f32.gmra.mxu0 %v2080
  %v2140 = vpop.f32.mrf.mxu0
  %v2141 = vadd.f32 %v2103, %v2140
  %2142 = vmatmul.f32.gmra.mxu0 %v2083
  %v2143 = vpop.f32.mrf.mxu0
  %v2144 = vadd.f32 %v2103, %v2143
  %2145 = vdwg.mxu0
  %v2146 = vmax.f32 %v2123, 0.0
  %v2147 = vmax.f32 %v2126, 0.0
  %v2148 = vmax.f32 %v2129, 0.0
  %v2149 = vmax.f32 %v2132, 0.0
  %v2150 = vmax.f32 %v2135, 0.0
  %v2151 = vmax.f32 %v2138, 0.0
  %v2152 = vmax.f32 %v2141, 0.0
  %v2153 = vmax.f32 %v2144, 0.0
  %2154 = vmatpush.msra.mxu0 0.0
  %2155 = vmatpush.msra.mxu0 0.0
  %2156 = vmatpush.msra.mxu0 0.0
  %2157 = vmatpush.msra.mxu0 0.0
  %2158 = vmatpush.msra.mxu0 0.0
  %2159 = vmatpush.msra.mxu0 0.0
  %2160 = vmatpush.msra.mxu0 0.0
  %2161 = vmatpush.msra.mxu0 0.0
  %2162 = vmatpush.msra.mxu0 %v2153
  %2163 = vmatpush.msra.mxu0 %v2152
  %2164 = vmatpush.msra.mxu0 %v2151
  %2165 = vmatpush.msra.mxu0 %v2150
  %2166 = vmatpush.msra.mxu0 %v2149
  %2167 = vmatpush.msra.mxu0 %v2148
  %2168 = vmatpush.msra.mxu0 %v2147
  %2169 = vmatpush.msra.mxu0 %v2146
  %2170 = vmatmul.f32.gmra.mxu0 %v1320
  %v2171 = vpop.f32.mrf.mxu0
  %v2172 = vadd.f32 0.0, %v2171
  %2173 = vmatmul.f32.gmra.mxu0 %v1323
  %v2174 = vpop.f32.mrf.mxu0
  %v2175 = vadd.f32 0.0, %v2174
  %2176 = vmatmul.f32.gmra.mxu0 %v1326
  %v2177 = vpop.f32.mrf.mxu0
  %v2178 = vadd.f32 0.0, %v2177
  %2179 = vmatmul.f32.gmra.mxu0 %v1329
  %v2180 = vpop.f32.mrf.mxu0
  %v2181 = vadd.f32 0.0, %v2180
  %2182 = vmatmul.f32.gmra.mxu0 %v1332
  %v2183 = vpop.f32.mrf.mxu0
  %v2184 = vadd.f32 0.0, %v2183
  %2185 = vmatmul.f32.gmra.mxu0 %v1335
  %v2186 = vpop.f32.mrf.mxu0
  %v2187 = vadd.f32 0.0, %v2186
  %2188 = vmatmul.f32.gmra.mxu0 %v1338
  %v2189 = vpop.f32.mrf.mxu0
  %v2190 = vadd.f32 0.0, %v2189
  %2191 = vmatmul.f32.gmra.mxu0 %v1341
  %v2192 = vpop.f32.mrf.mxu0
  %v2193 = vadd.f32 0.0, %v2192
  %2194 = vdwg.mxu0
  %v2195 = vld [vmem:[%s20] sm:$0xff]
  %v2196 = vld [vmem:[%s20 + $0x8] sm:$0xff]
  %v2197 = vld [vmem:[%s20 + $0x10] sm:$0xff]
  %v2198 = vld [vmem:[%s20 + $0x18] sm:$0xff]
  %v2199 = vld [vmem:[%s20 + $0x20] sm:$0xff]
  %v2200 = vld [vmem:[%s20 + $0x28] sm:$0xff]
  %v2201 = vld [vmem:[%s20 + $0x30] sm:$0xff]
  %v2202 = vld [vmem:[%s20 + $0x38] sm:$0xff]
  %v2203 = vld [vmem:[%s20 + $0x40] sm:$0xff]
  %v2204 = vld [vmem:[%s20 + $0x48] sm:$0xff]
  %v2205 = vld [vmem:[%s20 + $0x50] sm:$0xff]
  %v2206 = vld [vmem:[%s20 + $0x58] sm:$0xff]
  %v2207 = vld [vmem:[%s20 + $0x60] sm:$0xff]
  %v2208 = vld [vmem:[%s20 + $0x68] sm:$0xff]
  %v2209 = vld [vmem:[%s20 + $0x70] sm:$0xff]
  %v2210 = vld [vmem:[%s20 + $0x78] sm:$0xff]
  %v2211 = vld [vmem:[%s21] sm:$0x1]
  %v2213 = vperm.slane %v2211, 0
  %2215 = vmatpush.msra.mxu0 %v2210
  %2216 = vmatpush.msra.mxu0 %v2209
  %2217 = vmatpush.msra.mxu0 %v2208
  %2218 = vmatpush.msra.mxu0 %v2207
  %2219 = vmatpush.msra.mxu0 %v2206
  %2220 = vmatpush.msra.mxu0 %v2205
  %2221 = vmatpush.msra.mxu0 %v2204
  %2222 = vmatpush.msra.mxu0 %v2203
  %2223 = vmatpush.msra.mxu0 %v2202
  %2224 = vmatpush.msra.mxu0 %v2201
  %2225 = vmatpush.msra.mxu0 %v2200
  %2226 = vmatpush.msra.mxu0 %v2199
  %2227 = vmatpush.msra.mxu0 %v2198
  %2228 = vmatpush.msra.mxu0 %v2197
  %2229 = vmatpush.msra.mxu0 %v2196
  %2230 = vmatpush.msra.mxu0 %v2195
  %2231 = vmatmul.f32.gmra.mxu0 %v2172
  %v2232 = vpop.f32.mrf.mxu0
  %v2233 = vadd.f32 %v2213, %v2232
  %2234 = vmatmul.f32.gmra.mxu0 %v2175
  %v2235 = vpop.f32.mrf.mxu0
  %v2236 = vadd.f32 %v2213, %v2235
  %2237 = vmatmul.f32.gmra.mxu0 %v2178
  %v2238 = vpop.f32.mrf.mxu0
  %v2239 = vadd.f32 %v2213, %v2238
  %2240 = vmatmul.f32.gmra.mxu0 %v2181
  %v2241 = vpop.f32.mrf.mxu0
  %v2242 = vadd.f32 %v2213, %v2241
  %2243 = vmatmul.f32.gmra.mxu0 %v2184
  %v2244 = vpop.f32.mrf.mxu0
  %v2245 = vadd.f32 %v2213, %v2244
  %2246 = vmatmul.f32.gmra.mxu0 %v2187
  %v2247 = vpop.f32.mrf.mxu0
  %v2248 = vadd.f32 %v2213, %v2247
  %2249 = vmatmul.f32.gmra.mxu0 %v2190
  %v2250 = vpop.f32.mrf.mxu0
  %v2251 = vadd.f32 %v2213, %v2250
  %2252 = vmatmul.f32.gmra.mxu0 %v2193
  %v2253 = vpop.f32.mrf.mxu0
  %v2254 = vadd.f32 %v2213, %v2253
  %2255 = vdwg.mxu0
  %v2256 = vmax.f32 %v2233, 0.0
  %v2257 = vmax.f32 %v2236, 0.0
  %v2258 = vmax.f32 %v2239, 0.0
  %v2259 = vmax.f32 %v2242, 0.0
  %v2260 = vmax.f32 %v2245, 0.0
  %v2261 = vmax.f32 %v2248, 0.0
  %v2262 = vmax.f32 %v2251, 0.0
  %v2263 = vmax.f32 %v2254, 0.0
  %2264 = vmatpush.msra.mxu0 0.0
  %2265 = vmatpush.msra.mxu0 0.0
  %2266 = vmatpush.msra.mxu0 0.0
  %2267 = vmatpush.msra.mxu0 0.0
  %2268 = vmatpush.msra.mxu0 0.0
  %2269 = vmatpush.msra.mxu0 0.0
  %2270 = vmatpush.msra.mxu0 0.0
  %2271 = vmatpush.msra.mxu0 0.0
  %2272 = vmatpush.msra.mxu0 %v2263
  %2273 = vmatpush.msra.mxu0 %v2262
  %2274 = vmatpush.msra.mxu0 %v2261
  %2275 = vmatpush.msra.mxu0 %v2260
  %2276 = vmatpush.msra.mxu0 %v2259
  %2277 = vmatpush.msra.mxu0 %v2258
  %2278 = vmatpush.msra.mxu0 %v2257
  %2279 = vmatpush.msra.mxu0 %v2256
  %2280 = vmatmul.f32.gmra.mxu0 %v1320
  %v2281 = vpop.f32.mrf.mxu0
  %v2282 = vadd.f32 0.0, %v2281
  %2283 = vmatmul.f32.gmra.mxu0 %v1323
  %v2284 = vpop.f32.mrf.mxu0
  %v2285 = vadd.f32 0.0, %v2284
  %2286 = vmatmul.f32.gmra.mxu0 %v1326
  %v2287 = vpop.f32.mrf.mxu0
  %v2288 = vadd.f32 0.0, %v2287
  %2289 = vmatmul.f32.gmra.mxu0 %v1329
  %v2290 = vpop.f32.mrf.mxu0
  %v2291 = vadd.f32 0.0, %v2290
  %2292 = vmatmul.f32.gmra.mxu0 %v1332
  %v2293 = vpop.f32.mrf.mxu0
  %v2294 = vadd.f32 0.0, %v2293
  %2295 = vmatmul.f32.gmra.mxu0 %v1335
  %v2296 = vpop.f32.mrf.mxu0
  %v2297 = vadd.f32 0.0, %v2296
  %2298 = vmatmul.f32.gmra.mxu0 %v1338
  %v2299 = vpop.f32.mrf.mxu0
  %v2300 = vadd.f32 0.0, %v2299
  %2301 = vmatmul.f32.gmra.mxu0 %v1341
  %v2302 = vpop.f32.mrf.mxu0
  %v2303 = vadd.f32 0.0, %v2302
  %2304 = vdwg.mxu0
  %v2305 = vld [vmem:[%s22] sm:$0xff]
  %v2306 = vld [vmem:[%s22 + $0x8] sm:$0xff]
  %v2307 = vld [vmem:[%s22 + $0x10] sm:$0xff]
  %v2308 = vld [vmem:[%s22 + $0x18] sm:$0xff]
  %v2309 = vld [vmem:[%s22 + $0x20] sm:$0xff]
  %v2310 = vld [vmem:[%s22 + $0x28] sm:$0xff]
  %v2311 = vld [vmem:[%s22 + $0x30] sm:$0xff]
  %v2312 = vld [vmem:[%s22 + $0x38] sm:$0xff]
  %v2313 = vld [vmem:[%s22 + $0x40] sm:$0xff]
  %v2314 = vld [vmem:[%s22 + $0x48] sm:$0xff]
  %v2315 = vld [vmem:[%s22 + $0x50] sm:$0xff]
  %v2316 = vld [vmem:[%s22 + $0x58] sm:$0xff]
  %v2317 = vld [vmem:[%s22 + $0x60] sm:$0xff]
  %v2318 = vld [vmem:[%s22 + $0x68] sm:$0xff]
  %v2319 = vld [vmem:[%s22 + $0x70] sm:$0xff]
  %v2320 = vld [vmem:[%s22 + $0x78] sm:$0xff]
  %v2321 = vld [vmem:[%s23] sm:$0x1]
  %v2323 = vperm.slane %v2321, 0
  %2325 = vmatpush.msra.mxu0 %v2320
  %2326 = vmatpush.msra.mxu0 %v2319
  %2327 = vmatpush.msra.mxu0 %v2318
  %2328 = vmatpush.msra.mxu0 %v2317
  %2329 = vmatpush.msra.mxu0 %v2316
  %2330 = vmatpush.msra.mxu0 %v2315
  %2331 = vmatpush.msra.mxu0 %v2314
  %2332 = vmatpush.msra.mxu0 %v2313
  %2333 = vmatpush.msra.mxu0 %v2312
  %2334 = vmatpush.msra.mxu0 %v2311
  %2335 = vmatpush.msra.mxu0 %v2310
  %2336 = vmatpush.msra.mxu0 %v2309
  %2337 = vmatpush.msra.mxu0 %v2308
  %2338 = vmatpush.msra.mxu0 %v2307
  %2339 = vmatpush.msra.mxu0 %v2306
  %2340 = vmatpush.msra.mxu0 %v2305
  %2341 = vmatmul.f32.gmra.mxu0 %v2282
  %v2342 = vpop.f32.mrf.mxu0
  %v2343 = vadd.f32 %v2323, %v2342
  %2344 = vmatmul.f32.gmra.mxu0 %v2285
  %v2345 = vpop.f32.mrf.mxu0
  %v2346 = vadd.f32 %v2323, %v2345
  %2347 = vmatmul.f32.gmra.mxu0 %v2288
  %v2348 = vpop.f32.mrf.mxu0
  %v2349 = vadd.f32 %v2323, %v2348
  %2350 = vmatmul.f32.gmra.mxu0 %v2291
  %v2351 = vpop.f32.mrf.mxu0
  %v2352 = vadd.f32 %v2323, %v2351
  %2353 = vmatmul.f32.gmra.mxu0 %v2294
  %v2354 = vpop.f32.mrf.mxu0
  %v2355 = vadd.f32 %v2323, %v2354
  %2356 = vmatmul.f32.gmra.mxu0 %v2297
  %v2357 = vpop.f32.mrf.mxu0
  %v2358 = vadd.f32 %v2323, %v2357
  %2359 = vmatmul.f32.gmra.mxu0 %v2300
  %v2360 = vpop.f32.mrf.mxu0
  %v2361 = vadd.f32 %v2323, %v2360
  %2362 = vmatmul.f32.gmra.mxu0 %v2303
  %v2363 = vpop.f32.mrf.mxu0
  %v2364 = vadd.f32 %v2323, %v2363
  %2365 = vdwg.mxu0
  %s2366 = scalar_lea.vmem %s26, 64
  %2367 = vst [vmem:[%s2366] sm:$0xff] %v2343
  %2368 = vst [vmem:[%s2366 + $0x8] sm:$0xff] %v2346
  %2369 = vst [vmem:[%s2366 + $0x10] sm:$0xff] %v2349
  %2370 = vst [vmem:[%s2366 + $0x18] sm:$0xff] %v2352
  %2371 = vst [vmem:[%s2366 + $0x20] sm:$0xff] %v2355
  %2372 = vst [vmem:[%s2366 + $0x28] sm:$0xff] %v2358
  %2373 = vst [vmem:[%s2366 + $0x30] sm:$0xff] %v2361
  %2374 = vst [vmem:[%s2366 + $0x38] sm:$0xff] %v2364
  // Predicated region
  $region98: #{hopenet_forward.1} parent=0 // pred_check
    _
  $region99: #{hopenet_forward.1} parent=0 // pred_check_branch
    %2376 = sbr.rel (0) target = $region101
  $region100: #{hopenet_forward.1} parent=0 // pred_region
    _
  $region101: #{hopenet_forward.1} parent=0 // pred_fallthru
    _
  // Predicated region
  $region102: #{hopenet_forward.1} parent=0 // pred_check
    _
  $region103: #{hopenet_forward.1} parent=0 // pred_check_branch
    %2378 = sbr.rel (0) target = $region105
  $region104: #{hopenet_forward.1} parent=0 // pred_region
    _
  $region105: #{hopenet_forward.1} parent=0 // pred_fallthru
    _
  // Predicated region
  $region106: #{hopenet_forward.1} parent=0 // pred_check
    _
  $region107: #{hopenet_forward.1} parent=0 // pred_check_branch
    %2380 = sbr.rel (0) target = $region109
  $region108: #{hopenet_forward.1} parent=0 // pred_region
    _
  $region109: #{hopenet_forward.1} parent=0 // pred_fallthru
    _
  // Predicated region
  $region110: #{hopenet_forward.1} parent=0 // pred_check
    _
  $region111: #{hopenet_forward.1} parent=0 // pred_check_branch
    %2382 = sbr.rel (0) target = $region113
  $region112: #{hopenet_forward.1} parent=0 // pred_region
    _
  $region113: #{hopenet_forward.1} parent=0 // pred_fallthru
    _
  // Predicated region
  $region114: #{hopenet_forward.1} parent=0 // pred_check
    _
  $region115: #{hopenet_forward.1} parent=0 // pred_check_branch
    %2384 = sbr.rel (0) target = $region117
  $region116: #{hopenet_forward.1} parent=0 // pred_region
    _
  $region117: #{hopenet_forward.1} parent=0 // pred_fallthru
    _
  // Predicated region
  $region118: #{hopenet_forward.1} parent=0 // pred_check
    _
  $region119: #{hopenet_forward.1} parent=0 // pred_check_branch
    %2386 = sbr.rel (0) target = $region121
  $region120: #{hopenet_forward.1} parent=0 // pred_region
    _
  $region121: #{hopenet_forward.1} parent=0 // pred_fallthru
    _

</llo_original>
